<compile_context>
chip_gen: v5e
topology: v5e:2x2
jax: 0.10.0
libtpu: 0.0.40
codegen_flags: <defaults>
</compile_context>

<pallas_src>
import functools

import jax
import jax.numpy as jnp
from jax.experimental import pallas as pl
from jax.experimental.pallas import tpu as pltpu  # noqa: F401  (TPU backend; kept for future tiling)


# ----------------------------- Pallas kernel ------------------------------ #
def lstm_net_kernel(x_ref, wih_ref, whh_ref, b_ref, w12_ref, b12_ref, out_ref,
                    *, seq_len, batch):
    """Whole forward pass in a single kernel invocation (no grid).

    x_ref   : (T*B, I)  time-major flattened inputs (rows t*B .. t*B+B-1 = step t)
    wih_ref : (4, I, H) gate-major input->hidden weights (PyTorch gate order i,f,g,o)
    whh_ref : (4, H, H) gate-major hidden->hidden weights
    b_ref   : (4, 1, H) gate-major fused bias (b_ih + b_hh)
    w12_ref : (H, O)    fused output projection  W1^T @ W2^T
    b12_ref : (1, O)    fused output bias        b1 @ W2^T + b2
    out_ref : (B, O)
    """
    T, B = seq_len, batch
    H = whh_ref.shape[-1]

    # ---- Prologue: batched input projection, hoisted out of the recurrence.
    # One (T*B, I) @ (I, H) MXU pass per gate instead of T tiny per-step dots.
    x_all = x_ref[...]                                              # (T*B, I)
    xg = [jnp.dot(x_all, wih_ref[g], preferred_element_type=jnp.float32)
          + b_ref[g]                                                # (T*B, H)
          for g in range(4)]
    whh = [whh_ref[g] for g in range(4)]                            # (H, H) each

    # ---- Recurrence: fully unrolled (T small & static); h/c carried as values.
    h = jnp.zeros((B, H), jnp.float32)
    c = jnp.zeros((B, H), jnp.float32)
    for t in range(T):
        lo = t * B                                                  # static slice
        pre = [xg[g][lo:lo + B, :]
               + jnp.dot(h, whh[g], preferred_element_type=jnp.float32)
               for g in range(4)]                                   # (B, H) each
        i_g = jax.nn.sigmoid(pre[0])
        f_g = jax.nn.sigmoid(pre[1])
        g_g = jnp.tanh(pre[2])
        o_g = jax.nn.sigmoid(pre[3])
        c = f_g * c + i_g * g_g
        h = o_g * jnp.tanh(c)

    # ---- Fused linear1+linear2 on the last hidden state.
    y = jnp.dot(h, w12_ref[...], preferred_element_type=jnp.float32) + b12_ref[...]
    out_ref[...] = y.astype(out_ref.dtype)


# ------------------------------- wrapper ---------------------------------- #
def net_forward(x, params):
    """x: (B, T, I) float32, batch_first like PyTorch. Returns (B, O)."""
    B, T, I = x.shape
    w_ih, w_hh = params["w_ih"], params["w_hh"]
    b_ih, b_hh = params["b_ih"], params["b_hh"]
    w1, b1, w2, b2 = params["w1"], params["b1"], params["w2"], params["b2"]
    H = w_hh.shape[1]            # w_hh: (4H, H)
    O = w2.shape[0]              # w2:   (O, 5H)

    # ---- wrapper-side layout plumbing / algebraic prep (outside the kernel).
    # time-major & flattened over (T, B): kernel's input projection becomes one
    # well-shaped matmul; each timestep is a static sublane slice.
    x_flat = jnp.transpose(x, (1, 0, 2)).reshape(T * B, I)           # (T*B, I)

    # gate-major weights (gate, in, out); PyTorch gate order is i, f, g, o.
    wih_g = jnp.transpose(w_ih.reshape(4, H, I), (0, 2, 1))          # (4, I, H)
    whh_g = jnp.transpose(w_hh.reshape(4, H, H), (0, 2, 1))          # (4, H, H)
    b_g = (b_ih + b_hh).reshape(4, 1, H)                             # (4, 1, H)

    # linear1 -> linear2 has no nonlinearity between: fuse algebraically.
    w12 = w1.T @ w2.T                                                # (H, O)
    b12 = (b1 @ w2.T + b2).reshape(1, O)                             # (1, O)

    kernel = functools.partial(lstm_net_kernel, seq_len=T, batch=B)

    # Single invocation, no grid: all operands (few KiB) are resident in VMEM.
    # (For large batches on v7x one would add a leading batch-tile grid axis
    #  marked "parallel" to use both TensorCores; unnecessary at B=2.)
    return pl.pallas_call(
        kernel,
        out_shape=jax.ShapeDtypeStruct((B, O), jnp.float32),
    )(x_flat, wih_g, whh_g, b_g, w12, b12)


# ----------------------- pure-JAX reference (check) ------------------------ #
def net_forward_ref(x, params):
    H = params["w_hh"].shape[1]
    B = x.shape[0]
    wih_t = params["w_ih"].T
    whh_t = params["w_hh"].T
    b = params["b_ih"] + params["b_hh"]

    def step(carry, x_t):
        h, c = carry
        g = x_t @ wih_t + h @ whh_t + b
        i = jax.nn.sigmoid(g[:, 0 * H:1 * H])
        f = jax.nn.sigmoid(g[:, 1 * H:2 * H])
        gg = jnp.tanh(g[:, 2 * H:3 * H])
        o = jax.nn.sigmoid(g[:, 3 * H:4 * H])
        c = f * c + i * gg
        h = o * jnp.tanh(c)
        return (h, c), None

    h0 = jnp.zeros((B, H), jnp.float32)
    (h, _), _ = jax.lax.scan(step, (h0, h0), jnp.transpose(x, (1, 0, 2)))
    y = h @ params["w1"].T + params["b1"]
    y = y @ params["w2"].T + params["b2"]
    return y


# ------------------------------- params ------------------------------------ #
def init_params(key, input_size, hidden_size, output_size):
    ks = jax.random.split(key, 8)
    su = 1.0 / jnp.sqrt(hidden_size)          # PyTorch LSTM init range
    s1 = 1.0 / jnp.sqrt(hidden_size)          # linear1 fan_in = H
    s2 = 1.0 / jnp.sqrt(5 * hidden_size)      # linear2 fan_in = 5H
    u = lambda k, shape, s: jax.random.uniform(k, shape, jnp.float32, -s, s)
    return {
        "w_ih": u(ks[0], (4 * hidden_size, input_size), su),
        "w_hh": u(ks[1], (4 * hidden_size, hidden_size), su),
        "b_ih": u(ks[2], (4 * hidden_size,), su),
        "b_hh": u(ks[3], (4 * hidden_size,), su),
        "w1":   u(ks[4], (5 * hidden_size, hidden_size), s1),
        "b1":   u(ks[5], (5 * hidden_size,), s1),
        "w2":   u(ks[6], (output_size, 5 * hidden_size), s2),
        "b2":   u(ks[7], (output_size,), s2),
    }


if __name__ == "__main__":
    # Small shapes consistent with the module defaults.
    B, T, I = 2, 8, 4           # batch, seq_len, input_size
    H, O = 7, 4                 # hidden_size=7 (default), output_size=4

    key = jax.random.PRNGKey(0)
    kx, kp = jax.random.split(key)
    x = jax.random.normal(kx, (B, T, I), jnp.float32)
    params = init_params(kp, I, H, O)

    out = net_forward(x, params)
    out = jax.block_until_ready(out)

    ref = net_forward_ref(x, params)
    assert out.shape == (B, O)
    assert jnp.allclose(out, ref, atol=1e-3, rtol=1e-3), (out, ref)

    print("KERNEL_OK")
</pallas_src>

<mosaic_0001>
module attributes {stable_mosaic.version = 11 : i64} {
  func.func @lstm_net_kernel(%arg0: memref<16x4xf32, #tpu.memory_space<vmem>>, %arg1: memref<4x4x7xf32, #tpu.memory_space<vmem>>, %arg2: memref<4x7x7xf32, #tpu.memory_space<vmem>>, %arg3: memref<4x1x7xf32, #tpu.memory_space<vmem>>, %arg4: memref<7x4xf32, #tpu.memory_space<vmem>>, %arg5: memref<1x4xf32, #tpu.memory_space<vmem>>, %arg6: memref<2x4xf32, #tpu.memory_space<vmem>>) attributes {dimension_semantics = [], scalar_prefetch = 0 : i64, scratch_operands = 0 : i64, tpu.core_type = #tpu.core_type<tc>} {
    %c0 = arith.constant 0 : index
    %c0_0 = arith.constant 0 : index
    %0 = vector.load %arg0[%c0, %c0_0] : memref<16x4xf32, #tpu.memory_space<vmem>>, vector<16x4xf32>
    %c0_1 = arith.constant 0 : index
    %c0_2 = arith.constant 0 : index
    %c0_3 = arith.constant 0 : index
    %1 = vector.load %arg1[%c0_1, %c0_2, %c0_3] : memref<4x4x7xf32, #tpu.memory_space<vmem>>, vector<1x4x7xf32>
    %2 = vector.shape_cast %1 : vector<1x4x7xf32> to vector<4x7xf32>
    %cst = arith.constant dense<0.000000e+00> : vector<16x7xf32>
    %3 = tpu.matmul %0, %2, %cst {dimension_numbers = #tpu.dot_dimension_numbers<[1], [0], [0], [1], [0, 0, 1, 1], [], []>} : vector<16x4xf32>, vector<4x7xf32>, vector<16x7xf32> -> vector<16x7xf32>
    %c0_4 = arith.constant 0 : index
    %c0_5 = arith.constant 0 : index
    %c0_6 = arith.constant 0 : index
    %4 = vector.load %arg3[%c0_4, %c0_5, %c0_6] : memref<4x1x7xf32, #tpu.memory_space<vmem>>, vector<1x1x7xf32>
    %5 = vector.shape_cast %4 : vector<1x1x7xf32> to vector<1x7xf32>
    %6 = vector.broadcast %5 : vector<1x7xf32> to vector<16x7xf32>
    %7 = arith.addf %3, %6 : vector<16x7xf32>
    %c1 = arith.constant 1 : index
    %c0_7 = arith.constant 0 : index
    %c0_8 = arith.constant 0 : index
    %8 = vector.load %arg1[%c1, %c0_7, %c0_8] : memref<4x4x7xf32, #tpu.memory_space<vmem>>, vector<1x4x7xf32>
    %9 = vector.shape_cast %8 : vector<1x4x7xf32> to vector<4x7xf32>
    %cst_9 = arith.constant dense<0.000000e+00> : vector<16x7xf32>
    %10 = tpu.matmul %0, %9, %cst_9 {dimension_numbers = #tpu.dot_dimension_numbers<[1], [0], [0], [1], [0, 0, 1, 1], [], []>} : vector<16x4xf32>, vector<4x7xf32>, vector<16x7xf32> -> vector<16x7xf32>
    %c1_10 = arith.constant 1 : index
    %c0_11 = arith.constant 0 : index
    %c0_12 = arith.constant 0 : index
    %11 = vector.load %arg3[%c1_10, %c0_11, %c0_12] : memref<4x1x7xf32, #tpu.memory_space<vmem>>, vector<1x1x7xf32>
    %12 = vector.shape_cast %11 : vector<1x1x7xf32> to vector<1x7xf32>
    %13 = vector.broadcast %12 : vector<1x7xf32> to vector<16x7xf32>
    %14 = arith.addf %10, %13 : vector<16x7xf32>
    %c2 = arith.constant 2 : index
    %c0_13 = arith.constant 0 : index
    %c0_14 = arith.constant 0 : index
    %15 = vector.load %arg1[%c2, %c0_13, %c0_14] : memref<4x4x7xf32, #tpu.memory_space<vmem>>, vector<1x4x7xf32>
    %16 = vector.shape_cast %15 : vector<1x4x7xf32> to vector<4x7xf32>
    %cst_15 = arith.constant dense<0.000000e+00> : vector<16x7xf32>
    %17 = tpu.matmul %0, %16, %cst_15 {dimension_numbers = #tpu.dot_dimension_numbers<[1], [0], [0], [1], [0, 0, 1, 1], [], []>} : vector<16x4xf32>, vector<4x7xf32>, vector<16x7xf32> -> vector<16x7xf32>
    %c2_16 = arith.constant 2 : index
    %c0_17 = arith.constant 0 : index
    %c0_18 = arith.constant 0 : index
    %18 = vector.load %arg3[%c2_16, %c0_17, %c0_18] : memref<4x1x7xf32, #tpu.memory_space<vmem>>, vector<1x1x7xf32>
    %19 = vector.shape_cast %18 : vector<1x1x7xf32> to vector<1x7xf32>
    %20 = vector.broadcast %19 : vector<1x7xf32> to vector<16x7xf32>
    %21 = arith.addf %17, %20 : vector<16x7xf32>
    %c3 = arith.constant 3 : index
    %c0_19 = arith.constant 0 : index
    %c0_20 = arith.constant 0 : index
    %22 = vector.load %arg1[%c3, %c0_19, %c0_20] : memref<4x4x7xf32, #tpu.memory_space<vmem>>, vector<1x4x7xf32>
    %23 = vector.shape_cast %22 : vector<1x4x7xf32> to vector<4x7xf32>
    %cst_21 = arith.constant dense<0.000000e+00> : vector<16x7xf32>
    %24 = tpu.matmul %0, %23, %cst_21 {dimension_numbers = #tpu.dot_dimension_numbers<[1], [0], [0], [1], [0, 0, 1, 1], [], []>} : vector<16x4xf32>, vector<4x7xf32>, vector<16x7xf32> -> vector<16x7xf32>
    %c3_22 = arith.constant 3 : index
    %c0_23 = arith.constant 0 : index
    %c0_24 = arith.constant 0 : index
    %25 = vector.load %arg3[%c3_22, %c0_23, %c0_24] : memref<4x1x7xf32, #tpu.memory_space<vmem>>, vector<1x1x7xf32>
    %26 = vector.shape_cast %25 : vector<1x1x7xf32> to vector<1x7xf32>
    %27 = vector.broadcast %26 : vector<1x7xf32> to vector<16x7xf32>
    %28 = arith.addf %24, %27 : vector<16x7xf32>
    %c0_25 = arith.constant 0 : index
    %c0_26 = arith.constant 0 : index
    %c0_27 = arith.constant 0 : index
    %29 = vector.load %arg2[%c0_25, %c0_26, %c0_27] : memref<4x7x7xf32, #tpu.memory_space<vmem>>, vector<1x7x7xf32>
    %30 = vector.shape_cast %29 : vector<1x7x7xf32> to vector<7x7xf32>
    %c1_28 = arith.constant 1 : index
    %c0_29 = arith.constant 0 : index
    %c0_30 = arith.constant 0 : index
    %31 = vector.load %arg2[%c1_28, %c0_29, %c0_30] : memref<4x7x7xf32, #tpu.memory_space<vmem>>, vector<1x7x7xf32>
    %32 = vector.shape_cast %31 : vector<1x7x7xf32> to vector<7x7xf32>
    %c2_31 = arith.constant 2 : index
    %c0_32 = arith.constant 0 : index
    %c0_33 = arith.constant 0 : index
    %33 = vector.load %arg2[%c2_31, %c0_32, %c0_33] : memref<4x7x7xf32, #tpu.memory_space<vmem>>, vector<1x7x7xf32>
    %34 = vector.shape_cast %33 : vector<1x7x7xf32> to vector<7x7xf32>
    %c3_34 = arith.constant 3 : index
    %c0_35 = arith.constant 0 : index
    %c0_36 = arith.constant 0 : index
    %35 = vector.load %arg2[%c3_34, %c0_35, %c0_36] : memref<4x7x7xf32, #tpu.memory_space<vmem>>, vector<1x7x7xf32>
    %36 = vector.shape_cast %35 : vector<1x7x7xf32> to vector<7x7xf32>
    %cst_37 = arith.constant 0.000000e+00 : f32
    %37 = vector.broadcast %cst_37 : f32 to vector<2x7xf32>
    %cst_38 = arith.constant 0.000000e+00 : f32
    %38 = vector.broadcast %cst_38 : f32 to vector<2x7xf32>
    %39 = vector.extract_strided_slice %7 {offsets = [0, 0], sizes = [2, 7], strides = [1, 1]} : vector<16x7xf32> to vector<2x7xf32>
    %cst_39 = arith.constant dense<0.000000e+00> : vector<2x7xf32>
    %40 = tpu.matmul %37, %30, %cst_39 {dimension_numbers = #tpu.dot_dimension_numbers<[1], [0], [0], [1], [0, 0, 1, 1], [], []>} : vector<2x7xf32>, vector<7x7xf32>, vector<2x7xf32> -> vector<2x7xf32>
    %41 = arith.addf %39, %40 : vector<2x7xf32>
    %42 = vector.extract_strided_slice %14 {offsets = [0, 0], sizes = [2, 7], strides = [1, 1]} : vector<16x7xf32> to vector<2x7xf32>
    %cst_40 = arith.constant dense<0.000000e+00> : vector<2x7xf32>
    %43 = tpu.matmul %37, %32, %cst_40 {dimension_numbers = #tpu.dot_dimension_numbers<[1], [0], [0], [1], [0, 0, 1, 1], [], []>} : vector<2x7xf32>, vector<7x7xf32>, vector<2x7xf32> -> vector<2x7xf32>
    %44 = arith.addf %42, %43 : vector<2x7xf32>
    %45 = vector.extract_strided_slice %21 {offsets = [0, 0], sizes = [2, 7], strides = [1, 1]} : vector<16x7xf32> to vector<2x7xf32>
    %cst_41 = arith.constant dense<0.000000e+00> : vector<2x7xf32>
    %46 = tpu.matmul %37, %34, %cst_41 {dimension_numbers = #tpu.dot_dimension_numbers<[1], [0], [0], [1], [0, 0, 1, 1], [], []>} : vector<2x7xf32>, vector<7x7xf32>, vector<2x7xf32> -> vector<2x7xf32>
    %47 = arith.addf %45, %46 : vector<2x7xf32>
    %48 = vector.extract_strided_slice %28 {offsets = [0, 0], sizes = [2, 7], strides = [1, 1]} : vector<16x7xf32> to vector<2x7xf32>
    %cst_42 = arith.constant dense<0.000000e+00> : vector<2x7xf32>
    %49 = tpu.matmul %37, %36, %cst_42 {dimension_numbers = #tpu.dot_dimension_numbers<[1], [0], [0], [1], [0, 0, 1, 1], [], []>} : vector<2x7xf32>, vector<7x7xf32>, vector<2x7xf32> -> vector<2x7xf32>
    %50 = arith.addf %48, %49 : vector<2x7xf32>
    %51 = arith.negf %41 : vector<2x7xf32>
    %52 = math.exp %51 : vector<2x7xf32>
    %cst_43 = arith.constant 1.000000e+00 : f32
    %53 = vector.broadcast %cst_43 : f32 to vector<2x7xf32>
    %54 = arith.addf %53, %52 : vector<2x7xf32>
    %55 = arith.divf %53, %54 : vector<2x7xf32>
    %56 = arith.negf %44 : vector<2x7xf32>
    %57 = math.exp %56 : vector<2x7xf32>
    %cst_44 = arith.constant 1.000000e+00 : f32
    %58 = vector.broadcast %cst_44 : f32 to vector<2x7xf32>
    %59 = arith.addf %58, %57 : vector<2x7xf32>
    %60 = arith.divf %58, %59 : vector<2x7xf32>
    %61 = math.tanh %47 : vector<2x7xf32>
    %62 = arith.negf %50 : vector<2x7xf32>
    %63 = math.exp %62 : vector<2x7xf32>
    %cst_45 = arith.constant 1.000000e+00 : f32
    %64 = vector.broadcast %cst_45 : f32 to vector<2x7xf32>
    %65 = arith.addf %64, %63 : vector<2x7xf32>
    %66 = arith.divf %64, %65 : vector<2x7xf32>
    %67 = arith.mulf %60, %38 : vector<2x7xf32>
    %68 = arith.mulf %55, %61 : vector<2x7xf32>
    %69 = arith.addf %67, %68 : vector<2x7xf32>
    %70 = math.tanh %69 : vector<2x7xf32>
    %71 = arith.mulf %66, %70 : vector<2x7xf32>
    %72 = vector.extract_strided_slice %7 {offsets = [2, 0], sizes = [2, 7], strides = [1, 1]} : vector<16x7xf32> to vector<2x7xf32>
    %cst_46 = arith.constant dense<0.000000e+00> : vector<2x7xf32>
    %73 = tpu.matmul %71, %30, %cst_46 {dimension_numbers = #tpu.dot_dimension_numbers<[1], [0], [0], [1], [0, 0, 1, 1], [], []>} : vector<2x7xf32>, vector<7x7xf32>, vector<2x7xf32> -> vector<2x7xf32>
    %74 = arith.addf %72, %73 : vector<2x7xf32>
    %75 = vector.extract_strided_slice %14 {offsets = [2, 0], sizes = [2, 7], strides = [1, 1]} : vector<16x7xf32> to vector<2x7xf32>
    %cst_47 = arith.constant dense<0.000000e+00> : vector<2x7xf32>
    %76 = tpu.matmul %71, %32, %cst_47 {dimension_numbers = #tpu.dot_dimension_numbers<[1], [0], [0], [1], [0, 0, 1, 1], [], []>} : vector<2x7xf32>, vector<7x7xf32>, vector<2x7xf32> -> vector<2x7xf32>
    %77 = arith.addf %75, %76 : vector<2x7xf32>
    %78 = vector.extract_strided_slice %21 {offsets = [2, 0], sizes = [2, 7], strides = [1, 1]} : vector<16x7xf32> to vector<2x7xf32>
    %cst_48 = arith.constant dense<0.000000e+00> : vector<2x7xf32>
    %79 = tpu.matmul %71, %34, %cst_48 {dimension_numbers = #tpu.dot_dimension_numbers<[1], [0], [0], [1], [0, 0, 1, 1], [], []>} : vector<2x7xf32>, vector<7x7xf32>, vector<2x7xf32> -> vector<2x7xf32>
    %80 = arith.addf %78, %79 : vector<2x7xf32>
    %81 = vector.extract_strided_slice %28 {offsets = [2, 0], sizes = [2, 7], strides = [1, 1]} : vector<16x7xf32> to vector<2x7xf32>
    %cst_49 = arith.constant dense<0.000000e+00> : vector<2x7xf32>
    %82 = tpu.matmul %71, %36, %cst_49 {dimension_numbers = #tpu.dot_dimension_numbers<[1], [0], [0], [1], [0, 0, 1, 1], [], []>} : vector<2x7xf32>, vector<7x7xf32>, vector<2x7xf32> -> vector<2x7xf32>
    %83 = arith.addf %81, %82 : vector<2x7xf32>
    %84 = arith.negf %74 : vector<2x7xf32>
    %85 = math.exp %84 : vector<2x7xf32>
    %cst_50 = arith.constant 1.000000e+00 : f32
    %86 = vector.broadcast %cst_50 : f32 to vector<2x7xf32>
    %87 = arith.addf %86, %85 : vector<2x7xf32>
    %88 = arith.divf %86, %87 : vector<2x7xf32>
    %89 = arith.negf %77 : vector<2x7xf32>
    %90 = math.exp %89 : vector<2x7xf32>
    %cst_51 = arith.constant 1.000000e+00 : f32
    %91 = vector.broadcast %cst_51 : f32 to vector<2x7xf32>
    %92 = arith.addf %91, %90 : vector<2x7xf32>
    %93 = arith.divf %91, %92 : vector<2x7xf32>
    %94 = math.tanh %80 : vector<2x7xf32>
    %95 = arith.negf %83 : vector<2x7xf32>
    %96 = math.exp %95 : vector<2x7xf32>
    %cst_52 = arith.constant 1.000000e+00 : f32
    %97 = vector.broadcast %cst_52 : f32 to vector<2x7xf32>
    %98 = arith.addf %97, %96 : vector<2x7xf32>
    %99 = arith.divf %97, %98 : vector<2x7xf32>
    %100 = arith.mulf %93, %69 : vector<2x7xf32>
    %101 = arith.mulf %88, %94 : vector<2x7xf32>
    %102 = arith.addf %100, %101 : vector<2x7xf32>
    %103 = math.tanh %102 : vector<2x7xf32>
    %104 = arith.mulf %99, %103 : vector<2x7xf32>
    %105 = vector.extract_strided_slice %7 {offsets = [4, 0], sizes = [2, 7], strides = [1, 1]} : vector<16x7xf32> to vector<2x7xf32>
    %cst_53 = arith.constant dense<0.000000e+00> : vector<2x7xf32>
    %106 = tpu.matmul %104, %30, %cst_53 {dimension_numbers = #tpu.dot_dimension_numbers<[1], [0], [0], [1], [0, 0, 1, 1], [], []>} : vector<2x7xf32>, vector<7x7xf32>, vector<2x7xf32> -> vector<2x7xf32>
    %107 = arith.addf %105, %106 : vector<2x7xf32>
    %108 = vector.extract_strided_slice %14 {offsets = [4, 0], sizes = [2, 7], strides = [1, 1]} : vector<16x7xf32> to vector<2x7xf32>
    %cst_54 = arith.constant dense<0.000000e+00> : vector<2x7xf32>
    %109 = tpu.matmul %104, %32, %cst_54 {dimension_numbers = #tpu.dot_dimension_numbers<[1], [0], [0], [1], [0, 0, 1, 1], [], []>} : vector<2x7xf32>, vector<7x7xf32>, vector<2x7xf32> -> vector<2x7xf32>
    %110 = arith.addf %108, %109 : vector<2x7xf32>
    %111 = vector.extract_strided_slice %21 {offsets = [4, 0], sizes = [2, 7], strides = [1, 1]} : vector<16x7xf32> to vector<2x7xf32>
    %cst_55 = arith.constant dense<0.000000e+00> : vector<2x7xf32>
    %112 = tpu.matmul %104, %34, %cst_55 {dimension_numbers = #tpu.dot_dimension_numbers<[1], [0], [0], [1], [0, 0, 1, 1], [], []>} : vector<2x7xf32>, vector<7x7xf32>, vector<2x7xf32> -> vector<2x7xf32>
    %113 = arith.addf %111, %112 : vector<2x7xf32>
    %114 = vector.extract_strided_slice %28 {offsets = [4, 0], sizes = [2, 7], strides = [1, 1]} : vector<16x7xf32> to vector<2x7xf32>
    %cst_56 = arith.constant dense<0.000000e+00> : vector<2x7xf32>
    %115 = tpu.matmul %104, %36, %cst_56 {dimension_numbers = #tpu.dot_dimension_numbers<[1], [0], [0], [1], [0, 0, 1, 1], [], []>} : vector<2x7xf32>, vector<7x7xf32>, vector<2x7xf32> -> vector<2x7xf32>
    %116 = arith.addf %114, %115 : vector<2x7xf32>
    %117 = arith.negf %107 : vector<2x7xf32>
    %118 = math.exp %117 : vector<2x7xf32>
    %cst_57 = arith.constant 1.000000e+00 : f32
    %119 = vector.broadcast %cst_57 : f32 to vector<2x7xf32>
    %120 = arith.addf %119, %118 : vector<2x7xf32>
    %121 = arith.divf %119, %120 : vector<2x7xf32>
    %122 = arith.negf %110 : vector<2x7xf32>
    %123 = math.exp %122 : vector<2x7xf32>
    %cst_58 = arith.constant 1.000000e+00 : f32
    %124 = vector.broadcast %cst_58 : f32 to vector<2x7xf32>
    %125 = arith.addf %124, %123 : vector<2x7xf32>
    %126 = arith.divf %124, %125 : vector<2x7xf32>
    %127 = math.tanh %113 : vector<2x7xf32>
    %128 = arith.negf %116 : vector<2x7xf32>
    %129 = math.exp %128 : vector<2x7xf32>
    %cst_59 = arith.constant 1.000000e+00 : f32
    %130 = vector.broadcast %cst_59 : f32 to vector<2x7xf32>
    %131 = arith.addf %130, %129 : vector<2x7xf32>
    %132 = arith.divf %130, %131 : vector<2x7xf32>
    %133 = arith.mulf %126, %102 : vector<2x7xf32>
    %134 = arith.mulf %121, %127 : vector<2x7xf32>
    %135 = arith.addf %133, %134 : vector<2x7xf32>
    %136 = math.tanh %135 : vector<2x7xf32>
    %137 = arith.mulf %132, %136 : vector<2x7xf32>
    %138 = vector.extract_strided_slice %7 {offsets = [6, 0], sizes = [2, 7], strides = [1, 1]} : vector<16x7xf32> to vector<2x7xf32>
    %cst_60 = arith.constant dense<0.000000e+00> : vector<2x7xf32>
    %139 = tpu.matmul %137, %30, %cst_60 {dimension_numbers = #tpu.dot_dimension_numbers<[1], [0], [0], [1], [0, 0, 1, 1], [], []>} : vector<2x7xf32>, vector<7x7xf32>, vector<2x7xf32> -> vector<2x7xf32>
    %140 = arith.addf %138, %139 : vector<2x7xf32>
    %141 = vector.extract_strided_slice %14 {offsets = [6, 0], sizes = [2, 7], strides = [1, 1]} : vector<16x7xf32> to vector<2x7xf32>
    %cst_61 = arith.constant dense<0.000000e+00> : vector<2x7xf32>
    %142 = tpu.matmul %137, %32, %cst_61 {dimension_numbers = #tpu.dot_dimension_numbers<[1], [0], [0], [1], [0, 0, 1, 1], [], []>} : vector<2x7xf32>, vector<7x7xf32>, vector<2x7xf32> -> vector<2x7xf32>
    %143 = arith.addf %141, %142 : vector<2x7xf32>
    %144 = vector.extract_strided_slice %21 {offsets = [6, 0], sizes = [2, 7], strides = [1, 1]} : vector<16x7xf32> to vector<2x7xf32>
    %cst_62 = arith.constant dense<0.000000e+00> : vector<2x7xf32>
    %145 = tpu.matmul %137, %34, %cst_62 {dimension_numbers = #tpu.dot_dimension_numbers<[1], [0], [0], [1], [0, 0, 1, 1], [], []>} : vector<2x7xf32>, vector<7x7xf32>, vector<2x7xf32> -> vector<2x7xf32>
    %146 = arith.addf %144, %145 : vector<2x7xf32>
    %147 = vector.extract_strided_slice %28 {offsets = [6, 0], sizes = [2, 7], strides = [1, 1]} : vector<16x7xf32> to vector<2x7xf32>
    %cst_63 = arith.constant dense<0.000000e+00> : vector<2x7xf32>
    %148 = tpu.matmul %137, %36, %cst_63 {dimension_numbers = #tpu.dot_dimension_numbers<[1], [0], [0], [1], [0, 0, 1, 1], [], []>} : vector<2x7xf32>, vector<7x7xf32>, vector<2x7xf32> -> vector<2x7xf32>
    %149 = arith.addf %147, %148 : vector<2x7xf32>
    %150 = arith.negf %140 : vector<2x7xf32>
    %151 = math.exp %150 : vector<2x7xf32>
    %cst_64 = arith.constant 1.000000e+00 : f32
    %152 = vector.broadcast %cst_64 : f32 to vector<2x7xf32>
    %153 = arith.addf %152, %151 : vector<2x7xf32>
    %154 = arith.divf %152, %153 : vector<2x7xf32>
    %155 = arith.negf %143 : vector<2x7xf32>
    %156 = math.exp %155 : vector<2x7xf32>
    %cst_65 = arith.constant 1.000000e+00 : f32
    %157 = vector.broadcast %cst_65 : f32 to vector<2x7xf32>
    %158 = arith.addf %157, %156 : vector<2x7xf32>
    %159 = arith.divf %157, %158 : vector<2x7xf32>
    %160 = math.tanh %146 : vector<2x7xf32>
    %161 = arith.negf %149 : vector<2x7xf32>
    %162 = math.exp %161 : vector<2x7xf32>
    %cst_66 = arith.constant 1.000000e+00 : f32
    %163 = vector.broadcast %cst_66 : f32 to vector<2x7xf32>
    %164 = arith.addf %163, %162 : vector<2x7xf32>
    %165 = arith.divf %163, %164 : vector<2x7xf32>
    %166 = arith.mulf %159, %135 : vector<2x7xf32>
    %167 = arith.mulf %154, %160 : vector<2x7xf32>
    %168 = arith.addf %166, %167 : vector<2x7xf32>
    %169 = math.tanh %168 : vector<2x7xf32>
    %170 = arith.mulf %165, %169 : vector<2x7xf32>
    %171 = vector.extract_strided_slice %7 {offsets = [8, 0], sizes = [2, 7], strides = [1, 1]} : vector<16x7xf32> to vector<2x7xf32>
    %cst_67 = arith.constant dense<0.000000e+00> : vector<2x7xf32>
    %172 = tpu.matmul %170, %30, %cst_67 {dimension_numbers = #tpu.dot_dimension_numbers<[1], [0], [0], [1], [0, 0, 1, 1], [], []>} : vector<2x7xf32>, vector<7x7xf32>, vector<2x7xf32> -> vector<2x7xf32>
    %173 = arith.addf %171, %172 : vector<2x7xf32>
    %174 = vector.extract_strided_slice %14 {offsets = [8, 0], sizes = [2, 7], strides = [1, 1]} : vector<16x7xf32> to vector<2x7xf32>
    %cst_68 = arith.constant dense<0.000000e+00> : vector<2x7xf32>
    %175 = tpu.matmul %170, %32, %cst_68 {dimension_numbers = #tpu.dot_dimension_numbers<[1], [0], [0], [1], [0, 0, 1, 1], [], []>} : vector<2x7xf32>, vector<7x7xf32>, vector<2x7xf32> -> vector<2x7xf32>
    %176 = arith.addf %174, %175 : vector<2x7xf32>
    %177 = vector.extract_strided_slice %21 {offsets = [8, 0], sizes = [2, 7], strides = [1, 1]} : vector<16x7xf32> to vector<2x7xf32>
    %cst_69 = arith.constant dense<0.000000e+00> : vector<2x7xf32>
    %178 = tpu.matmul %170, %34, %cst_69 {dimension_numbers = #tpu.dot_dimension_numbers<[1], [0], [0], [1], [0, 0, 1, 1], [], []>} : vector<2x7xf32>, vector<7x7xf32>, vector<2x7xf32> -> vector<2x7xf32>
    %179 = arith.addf %177, %178 : vector<2x7xf32>
    %180 = vector.extract_strided_slice %28 {offsets = [8, 0], sizes = [2, 7], strides = [1, 1]} : vector<16x7xf32> to vector<2x7xf32>
    %cst_70 = arith.constant dense<0.000000e+00> : vector<2x7xf32>
    %181 = tpu.matmul %170, %36, %cst_70 {dimension_numbers = #tpu.dot_dimension_numbers<[1], [0], [0], [1], [0, 0, 1, 1], [], []>} : vector<2x7xf32>, vector<7x7xf32>, vector<2x7xf32> -> vector<2x7xf32>
    %182 = arith.addf %180, %181 : vector<2x7xf32>
    %183 = arith.negf %173 : vector<2x7xf32>
    %184 = math.exp %183 : vector<2x7xf32>
    %cst_71 = arith.constant 1.000000e+00 : f32
    %185 = vector.broadcast %cst_71 : f32 to vector<2x7xf32>
    %186 = arith.addf %185, %184 : vector<2x7xf32>
    %187 = arith.divf %185, %186 : vector<2x7xf32>
    %188 = arith.negf %176 : vector<2x7xf32>
    %189 = math.exp %188 : vector<2x7xf32>
    %cst_72 = arith.constant 1.000000e+00 : f32
    %190 = vector.broadcast %cst_72 : f32 to vector<2x7xf32>
    %191 = arith.addf %190, %189 : vector<2x7xf32>
    %192 = arith.divf %190, %191 : vector<2x7xf32>
    %193 = math.tanh %179 : vector<2x7xf32>
    %194 = arith.negf %182 : vector<2x7xf32>
    %195 = math.exp %194 : vector<2x7xf32>
    %cst_73 = arith.constant 1.000000e+00 : f32
    %196 = vector.broadcast %cst_73 : f32 to vector<2x7xf32>
    %197 = arith.addf %196, %195 : vector<2x7xf32>
    %198 = arith.divf %196, %197 : vector<2x7xf32>
    %199 = arith.mulf %192, %168 : vector<2x7xf32>
    %200 = arith.mulf %187, %193 : vector<2x7xf32>
    %201 = arith.addf %199, %200 : vector<2x7xf32>
    %202 = math.tanh %201 : vector<2x7xf32>
    %203 = arith.mulf %198, %202 : vector<2x7xf32>
    %204 = vector.extract_strided_slice %7 {offsets = [10, 0], sizes = [2, 7], strides = [1, 1]} : vector<16x7xf32> to vector<2x7xf32>
    %cst_74 = arith.constant dense<0.000000e+00> : vector<2x7xf32>
    %205 = tpu.matmul %203, %30, %cst_74 {dimension_numbers = #tpu.dot_dimension_numbers<[1], [0], [0], [1], [0, 0, 1, 1], [], []>} : vector<2x7xf32>, vector<7x7xf32>, vector<2x7xf32> -> vector<2x7xf32>
    %206 = arith.addf %204, %205 : vector<2x7xf32>
    %207 = vector.extract_strided_slice %14 {offsets = [10, 0], sizes = [2, 7], strides = [1, 1]} : vector<16x7xf32> to vector<2x7xf32>
    %cst_75 = arith.constant dense<0.000000e+00> : vector<2x7xf32>
    %208 = tpu.matmul %203, %32, %cst_75 {dimension_numbers = #tpu.dot_dimension_numbers<[1], [0], [0], [1], [0, 0, 1, 1], [], []>} : vector<2x7xf32>, vector<7x7xf32>, vector<2x7xf32> -> vector<2x7xf32>
    %209 = arith.addf %207, %208 : vector<2x7xf32>
    %210 = vector.extract_strided_slice %21 {offsets = [10, 0], sizes = [2, 7], strides = [1, 1]} : vector<16x7xf32> to vector<2x7xf32>
    %cst_76 = arith.constant dense<0.000000e+00> : vector<2x7xf32>
    %211 = tpu.matmul %203, %34, %cst_76 {dimension_numbers = #tpu.dot_dimension_numbers<[1], [0], [0], [1], [0, 0, 1, 1], [], []>} : vector<2x7xf32>, vector<7x7xf32>, vector<2x7xf32> -> vector<2x7xf32>
    %212 = arith.addf %210, %211 : vector<2x7xf32>
    %213 = vector.extract_strided_slice %28 {offsets = [10, 0], sizes = [2, 7], strides = [1, 1]} : vector<16x7xf32> to vector<2x7xf32>
    %cst_77 = arith.constant dense<0.000000e+00> : vector<2x7xf32>
    %214 = tpu.matmul %203, %36, %cst_77 {dimension_numbers = #tpu.dot_dimension_numbers<[1], [0], [0], [1], [0, 0, 1, 1], [], []>} : vector<2x7xf32>, vector<7x7xf32>, vector<2x7xf32> -> vector<2x7xf32>
    %215 = arith.addf %213, %214 : vector<2x7xf32>
    %216 = arith.negf %206 : vector<2x7xf32>
    %217 = math.exp %216 : vector<2x7xf32>
    %cst_78 = arith.constant 1.000000e+00 : f32
    %218 = vector.broadcast %cst_78 : f32 to vector<2x7xf32>
    %219 = arith.addf %218, %217 : vector<2x7xf32>
    %220 = arith.divf %218, %219 : vector<2x7xf32>
    %221 = arith.negf %209 : vector<2x7xf32>
    %222 = math.exp %221 : vector<2x7xf32>
    %cst_79 = arith.constant 1.000000e+00 : f32
    %223 = vector.broadcast %cst_79 : f32 to vector<2x7xf32>
    %224 = arith.addf %223, %222 : vector<2x7xf32>
    %225 = arith.divf %223, %224 : vector<2x7xf32>
    %226 = math.tanh %212 : vector<2x7xf32>
    %227 = arith.negf %215 : vector<2x7xf32>
    %228 = math.exp %227 : vector<2x7xf32>
    %cst_80 = arith.constant 1.000000e+00 : f32
    %229 = vector.broadcast %cst_80 : f32 to vector<2x7xf32>
    %230 = arith.addf %229, %228 : vector<2x7xf32>
    %231 = arith.divf %229, %230 : vector<2x7xf32>
    %232 = arith.mulf %225, %201 : vector<2x7xf32>
    %233 = arith.mulf %220, %226 : vector<2x7xf32>
    %234 = arith.addf %232, %233 : vector<2x7xf32>
    %235 = math.tanh %234 : vector<2x7xf32>
    %236 = arith.mulf %231, %235 : vector<2x7xf32>
    %237 = vector.extract_strided_slice %7 {offsets = [12, 0], sizes = [2, 7], strides = [1, 1]} : vector<16x7xf32> to vector<2x7xf32>
    %cst_81 = arith.constant dense<0.000000e+00> : vector<2x7xf32>
    %238 = tpu.matmul %236, %30, %cst_81 {dimension_numbers = #tpu.dot_dimension_numbers<[1], [0], [0], [1], [0, 0, 1, 1], [], []>} : vector<2x7xf32>, vector<7x7xf32>, vector<2x7xf32> -> vector<2x7xf32>
    %239 = arith.addf %237, %238 : vector<2x7xf32>
    %240 = vector.extract_strided_slice %14 {offsets = [12, 0], sizes = [2, 7], strides = [1, 1]} : vector<16x7xf32> to vector<2x7xf32>
    %cst_82 = arith.constant dense<0.000000e+00> : vector<2x7xf32>
    %241 = tpu.matmul %236, %32, %cst_82 {dimension_numbers = #tpu.dot_dimension_numbers<[1], [0], [0], [1], [0, 0, 1, 1], [], []>} : vector<2x7xf32>, vector<7x7xf32>, vector<2x7xf32> -> vector<2x7xf32>
    %242 = arith.addf %240, %241 : vector<2x7xf32>
    %243 = vector.extract_strided_slice %21 {offsets = [12, 0], sizes = [2, 7], strides = [1, 1]} : vector<16x7xf32> to vector<2x7xf32>
    %cst_83 = arith.constant dense<0.000000e+00> : vector<2x7xf32>
    %244 = tpu.matmul %236, %34, %cst_83 {dimension_numbers = #tpu.dot_dimension_numbers<[1], [0], [0], [1], [0, 0, 1, 1], [], []>} : vector<2x7xf32>, vector<7x7xf32>, vector<2x7xf32> -> vector<2x7xf32>
    %245 = arith.addf %243, %244 : vector<2x7xf32>
    %246 = vector.extract_strided_slice %28 {offsets = [12, 0], sizes = [2, 7], strides = [1, 1]} : vector<16x7xf32> to vector<2x7xf32>
    %cst_84 = arith.constant dense<0.000000e+00> : vector<2x7xf32>
    %247 = tpu.matmul %236, %36, %cst_84 {dimension_numbers = #tpu.dot_dimension_numbers<[1], [0], [0], [1], [0, 0, 1, 1], [], []>} : vector<2x7xf32>, vector<7x7xf32>, vector<2x7xf32> -> vector<2x7xf32>
    %248 = arith.addf %246, %247 : vector<2x7xf32>
    %249 = arith.negf %239 : vector<2x7xf32>
    %250 = math.exp %249 : vector<2x7xf32>
    %cst_85 = arith.constant 1.000000e+00 : f32
    %251 = vector.broadcast %cst_85 : f32 to vector<2x7xf32>
    %252 = arith.addf %251, %250 : vector<2x7xf32>
    %253 = arith.divf %251, %252 : vector<2x7xf32>
    %254 = arith.negf %242 : vector<2x7xf32>
    %255 = math.exp %254 : vector<2x7xf32>
    %cst_86 = arith.constant 1.000000e+00 : f32
    %256 = vector.broadcast %cst_86 : f32 to vector<2x7xf32>
    %257 = arith.addf %256, %255 : vector<2x7xf32>
    %258 = arith.divf %256, %257 : vector<2x7xf32>
    %259 = math.tanh %245 : vector<2x7xf32>
    %260 = arith.negf %248 : vector<2x7xf32>
    %261 = math.exp %260 : vector<2x7xf32>
    %cst_87 = arith.constant 1.000000e+00 : f32
    %262 = vector.broadcast %cst_87 : f32 to vector<2x7xf32>
    %263 = arith.addf %262, %261 : vector<2x7xf32>
    %264 = arith.divf %262, %263 : vector<2x7xf32>
    %265 = arith.mulf %258, %234 : vector<2x7xf32>
    %266 = arith.mulf %253, %259 : vector<2x7xf32>
    %267 = arith.addf %265, %266 : vector<2x7xf32>
    %268 = math.tanh %267 : vector<2x7xf32>
    %269 = arith.mulf %264, %268 : vector<2x7xf32>
    %270 = vector.extract_strided_slice %7 {offsets = [14, 0], sizes = [2, 7], strides = [1, 1]} : vector<16x7xf32> to vector<2x7xf32>
    %cst_88 = arith.constant dense<0.000000e+00> : vector<2x7xf32>
    %271 = tpu.matmul %269, %30, %cst_88 {dimension_numbers = #tpu.dot_dimension_numbers<[1], [0], [0], [1], [0, 0, 1, 1], [], []>} : vector<2x7xf32>, vector<7x7xf32>, vector<2x7xf32> -> vector<2x7xf32>
    %272 = arith.addf %270, %271 : vector<2x7xf32>
    %273 = vector.extract_strided_slice %14 {offsets = [14, 0], sizes = [2, 7], strides = [1, 1]} : vector<16x7xf32> to vector<2x7xf32>
    %cst_89 = arith.constant dense<0.000000e+00> : vector<2x7xf32>
    %274 = tpu.matmul %269, %32, %cst_89 {dimension_numbers = #tpu.dot_dimension_numbers<[1], [0], [0], [1], [0, 0, 1, 1], [], []>} : vector<2x7xf32>, vector<7x7xf32>, vector<2x7xf32> -> vector<2x7xf32>
    %275 = arith.addf %273, %274 : vector<2x7xf32>
    %276 = vector.extract_strided_slice %21 {offsets = [14, 0], sizes = [2, 7], strides = [1, 1]} : vector<16x7xf32> to vector<2x7xf32>
    %cst_90 = arith.constant dense<0.000000e+00> : vector<2x7xf32>
    %277 = tpu.matmul %269, %34, %cst_90 {dimension_numbers = #tpu.dot_dimension_numbers<[1], [0], [0], [1], [0, 0, 1, 1], [], []>} : vector<2x7xf32>, vector<7x7xf32>, vector<2x7xf32> -> vector<2x7xf32>
    %278 = arith.addf %276, %277 : vector<2x7xf32>
    %279 = vector.extract_strided_slice %28 {offsets = [14, 0], sizes = [2, 7], strides = [1, 1]} : vector<16x7xf32> to vector<2x7xf32>
    %cst_91 = arith.constant dense<0.000000e+00> : vector<2x7xf32>
    %280 = tpu.matmul %269, %36, %cst_91 {dimension_numbers = #tpu.dot_dimension_numbers<[1], [0], [0], [1], [0, 0, 1, 1], [], []>} : vector<2x7xf32>, vector<7x7xf32>, vector<2x7xf32> -> vector<2x7xf32>
    %281 = arith.addf %279, %280 : vector<2x7xf32>
    %282 = arith.negf %272 : vector<2x7xf32>
    %283 = math.exp %282 : vector<2x7xf32>
    %cst_92 = arith.constant 1.000000e+00 : f32
    %284 = vector.broadcast %cst_92 : f32 to vector<2x7xf32>
    %285 = arith.addf %284, %283 : vector<2x7xf32>
    %286 = arith.divf %284, %285 : vector<2x7xf32>
    %287 = arith.negf %275 : vector<2x7xf32>
    %288 = math.exp %287 : vector<2x7xf32>
    %cst_93 = arith.constant 1.000000e+00 : f32
    %289 = vector.broadcast %cst_93 : f32 to vector<2x7xf32>
    %290 = arith.addf %289, %288 : vector<2x7xf32>
    %291 = arith.divf %289, %290 : vector<2x7xf32>
    %292 = math.tanh %278 : vector<2x7xf32>
    %293 = arith.negf %281 : vector<2x7xf32>
    %294 = math.exp %293 : vector<2x7xf32>
    %cst_94 = arith.constant 1.000000e+00 : f32
    %295 = vector.broadcast %cst_94 : f32 to vector<2x7xf32>
    %296 = arith.addf %295, %294 : vector<2x7xf32>
    %297 = arith.divf %295, %296 : vector<2x7xf32>
    %298 = arith.mulf %291, %267 : vector<2x7xf32>
    %299 = arith.mulf %286, %292 : vector<2x7xf32>
    %300 = arith.addf %298, %299 : vector<2x7xf32>
    %301 = math.tanh %300 : vector<2x7xf32>
    %302 = arith.mulf %297, %301 : vector<2x7xf32>
    %c0_95 = arith.constant 0 : index
    %c0_96 = arith.constant 0 : index
    %303 = vector.load %arg4[%c0_95, %c0_96] : memref<7x4xf32, #tpu.memory_space<vmem>>, vector<7x4xf32>
    %cst_97 = arith.constant dense<0.000000e+00> : vector<2x4xf32>
    %304 = tpu.matmul %302, %303, %cst_97 {dimension_numbers = #tpu.dot_dimension_numbers<[1], [0], [0], [1], [0, 0, 1, 1], [], []>} : vector<2x7xf32>, vector<7x4xf32>, vector<2x4xf32> -> vector<2x4xf32>
    %c0_98 = arith.constant 0 : index
    %c0_99 = arith.constant 0 : index
    %305 = vector.load %arg5[%c0_98, %c0_99] : memref<1x4xf32, #tpu.memory_space<vmem>>, vector<1x4xf32>
    %306 = vector.broadcast %305 : vector<1x4xf32> to vector<2x4xf32>
    %307 = arith.addf %304, %306 : vector<2x4xf32>
    %c0_100 = arith.constant 0 : index
    %c0_101 = arith.constant 0 : index
    %308 = vector.load %arg6[%c0_100, %c0_101] : memref<2x4xf32, #tpu.memory_space<vmem>>, vector<2x4xf32>
    tpu.vector_store %arg6[%c0_100, %c0_101], %307 {strides = array<i32>} : memref<2x4xf32, #tpu.memory_space<vmem>>, vector<2x4xf32>,
    return
  }
}

</mosaic_0001>

<llo_original>
// kernel: tpu_custom_call.1
$region0: #{tpu_custom_call.1}
  #allocation0 [shape = 'u32[]', space=smem, size = 0x4, offset = 0x4, fixed_abs, tag = 'smem constant byte address 0x4 - core index']
  #allocation1 [shape = 'u32[72,128]{1,0:T(1,128)}', space=vmem, size = 0x9000, scoped, tag = 'internal scratch']
  %s0 = inlined_call_operand.vmem [shape: f32[16,4], index: 0, kind: input, shape index: {}]
  %s1 = inlined_call_operand.vmem [shape: f32[4,4,7], index: 1, kind: input, shape index: {}]
  %s2 = inlined_call_operand.vmem [shape: f32[4,7,7], index: 2, kind: input, shape index: {}]
  %s3 = inlined_call_operand.vmem [shape: f32[4,1,7], index: 3, kind: input, shape index: {}]
  %s4 = inlined_call_operand.vmem [shape: f32[7,4], index: 4, kind: input, shape index: {}]
  %s5 = inlined_call_operand.vmem [shape: f32[1,4], index: 5, kind: input, shape index: {}]
  %s6 = inlined_call_operand.hbm [shape: f32[2,4], index: 6, kind: output, shape index: {}]
  %s7 = sld [smem:[#allocation0]]
  $region34: #{tpu_custom_call.1} parent=0
    _
  %s9 = ssub.s32 1, %s7
  %s10 = scalar_select 0, %s9, %s7
  $region1: #{tpu_custom_call.1} parent=0
    #allocation2 [shape = 'u8[1024]{0}', space=vmem, size = 0x400, scoped, tag = 'output window, operand 0, single buffered']
    #allocation3 [shape = 's32[1]{0}', space=sflag, size = 0x4, scoped, tag = 'scoped memory for tpu_custom_call.1']
    %11 = vsyncpa [#allocation3], 0
    // Predicated region
    $region2: #{tpu_custom_call.1} parent=1 // pred_check
      _
    $region3: #{tpu_custom_call.1} parent=1 // pred_check_branch
      %13 = sbr.rel (0) target = $region5
    $region4: #{tpu_custom_call.1} parent=1 // pred_region
      _
    $region5: #{tpu_custom_call.1} parent=1 // pred_fallthru
      _
    // Predicated region
    $region6: #{tpu_custom_call.1} parent=1 // pred_check
      _
    $region7: #{tpu_custom_call.1} parent=1 // pred_check_branch
      %15 = sbr.rel (0) target = $region9
    $region8: #{tpu_custom_call.1} parent=1 // pred_region
      _
    $region9: #{tpu_custom_call.1} parent=1 // pred_fallthru
      _
    // Predicated region
    $region10: #{tpu_custom_call.1} parent=1 // pred_check
      _
    $region11: #{tpu_custom_call.1} parent=1 // pred_check_branch
      %17 = sbr.rel (0) target = $region13
    $region12: #{tpu_custom_call.1} parent=1 // pred_region
      _
    $region13: #{tpu_custom_call.1} parent=1 // pred_fallthru
      _
    // Predicated region
    $region14: #{tpu_custom_call.1} parent=1 // pred_check
      _
    $region15: #{tpu_custom_call.1} parent=1 // pred_check_branch
      %19 = sbr.rel (0) target = $region17
    $region16: #{tpu_custom_call.1} parent=1 // pred_region
      _
    $region17: #{tpu_custom_call.1} parent=1 // pred_fallthru
      _
    // Predicated region
    $region18: #{tpu_custom_call.1} parent=1 // pred_check
      _
    $region19: #{tpu_custom_call.1} parent=1 // pred_check_branch
      %21 = sbr.rel (0) target = $region21
    $region20: #{tpu_custom_call.1} parent=1 // pred_region
      _
    $region21: #{tpu_custom_call.1} parent=1 // pred_fallthru
      _
    // Predicated region
    $region22: #{tpu_custom_call.1} parent=1 // pred_check
      _
    $region23: #{tpu_custom_call.1} parent=1 // pred_check_branch
      %23 = sbr.rel (0) target = $region25
    $region24: #{tpu_custom_call.1} parent=1 // pred_region
      _
    $region25: #{tpu_custom_call.1} parent=1 // pred_fallthru
      _
    %v24 = vld [vmem:[%s0] sm:$0xff]
    %v25 = vld [vmem:[%s0 + $0x8] sm:$0xff]
    %v26 = vld [vmem:[%s1] sm:$0xf]
    %v27 = vld [vmem:[%s3] sm:$0x1]
    %v29 = vperm.slane %v27, 0
    %vm31 = vcmask 31744
    %v33 = vsel %vm31, %v24, 0
    %v36 = vsel %vm31, %v25, 0
    %vm38 = vcmask 1043456
    %v40 = vsel %vm38, %v26, 0
    %42 = vmatpush.msra.mxu0 0.0
    %43 = vmatpush.msra.mxu0 0.0
    %44 = vmatpush.msra.mxu0 0.0
    %45 = vmatpush.msra.mxu0 0.0
    %46 = vmatpush.msra.mxu0 0.0
    %47 = vmatpush.msra.mxu0 0.0
    %48 = vmatpush.msra.mxu0 0.0
    %49 = vmatpush.msra.mxu0 0.0
    %50 = vmatpush.msra.mxu0 0.0
    %51 = vmatpush.msra.mxu0 0.0
    %52 = vmatpush.msra.mxu0 0.0
    %53 = vmatpush.msra.mxu0 0.0
    %54 = vmatpush.msra.mxu0 0.0
    %55 = vmatpush.msra.mxu0 0.0
    %56 = vmatpush.msra.mxu0 0.0
    %57 = vmatpush.msra.mxu0 %v40
    %58 = vmatmul.f32.gmra.mxu0 %v33
    %v59 = vpop.f32.mrf.mxu0
    %v60 = vadd.f32 %v29, %v59
    %61 = vmatmul.f32.gmra.mxu0 %v36
    %v62 = vpop.f32.mrf.mxu0
    %v63 = vadd.f32 %v29, %v62
    %64 = vdwg.mxu0
    %s65 = scalar_lea.vmem %s1, 4
    %v66 = vld [vmem:[%s65] sm:$0xf]
    %s67 = scalar_lea.vmem %s3, 1
    %v68 = vld [vmem:[%s67] sm:$0x1]
    %v70 = vperm.slane %v68, 0
    %v73 = vsel %vm38, %v66, 0
    %75 = vmatpush.msra.mxu0 0.0
    %76 = vmatpush.msra.mxu0 0.0
    %77 = vmatpush.msra.mxu0 0.0
    %78 = vmatpush.msra.mxu0 0.0
    %79 = vmatpush.msra.mxu0 0.0
    %80 = vmatpush.msra.mxu0 0.0
    %81 = vmatpush.msra.mxu0 0.0
    %82 = vmatpush.msra.mxu0 0.0
    %83 = vmatpush.msra.mxu0 0.0
    %84 = vmatpush.msra.mxu0 0.0
    %85 = vmatpush.msra.mxu0 0.0
    %86 = vmatpush.msra.mxu0 0.0
    %87 = vmatpush.msra.mxu0 0.0
    %88 = vmatpush.msra.mxu0 0.0
    %89 = vmatpush.msra.mxu0 0.0
    %90 = vmatpush.msra.mxu0 %v73
    %91 = vmatmul.f32.gmra.mxu0 %v33
    %v92 = vpop.f32.mrf.mxu0
    %v93 = vadd.f32 %v70, %v92
    %94 = vmatmul.f32.gmra.mxu0 %v36
    %v95 = vpop.f32.mrf.mxu0
    %v96 = vadd.f32 %v70, %v95
    %97 = vdwg.mxu0
    %s98 = scalar_lea.vmem %s1, 8
    %v99 = vld [vmem:[%s98] sm:$0xf]
    %s100 = scalar_lea.vmem %s3, 2
    %v101 = vld [vmem:[%s100] sm:$0x1]
    %v103 = vperm.slane %v101, 0
    %v106 = vsel %vm38, %v99, 0
    %108 = vmatpush.msra.mxu0 0.0
    %109 = vmatpush.msra.mxu0 0.0
    %110 = vmatpush.msra.mxu0 0.0
    %111 = vmatpush.msra.mxu0 0.0
    %112 = vmatpush.msra.mxu0 0.0
    %113 = vmatpush.msra.mxu0 0.0
    %114 = vmatpush.msra.mxu0 0.0
    %115 = vmatpush.msra.mxu0 0.0
    %116 = vmatpush.msra.mxu0 0.0
    %117 = vmatpush.msra.mxu0 0.0
    %118 = vmatpush.msra.mxu0 0.0
    %119 = vmatpush.msra.mxu0 0.0
    %120 = vmatpush.msra.mxu0 0.0
    %121 = vmatpush.msra.mxu0 0.0
    %122 = vmatpush.msra.mxu0 0.0
    %123 = vmatpush.msra.mxu0 %v106
    %124 = vmatmul.f32.gmra.mxu0 %v33
    %v125 = vpop.f32.mrf.mxu0
    %v126 = vadd.f32 %v103, %v125
    %127 = vmatmul.f32.gmra.mxu0 %v36
    %v128 = vpop.f32.mrf.mxu0
    %v129 = vadd.f32 %v103, %v128
    %130 = vdwg.mxu0
    %s131 = scalar_lea.vmem %s1, 12
    %v132 = vld [vmem:[%s131] sm:$0xf]
    %s133 = scalar_lea.vmem %s3, 3
    %v134 = vld [vmem:[%s133] sm:$0x1]
    %v136 = vperm.slane %v134, 0
    %v139 = vsel %vm38, %v132, 0
    %141 = vmatpush.msra.mxu0 0.0
    %142 = vmatpush.msra.mxu0 0.0
    %143 = vmatpush.msra.mxu0 0.0
    %144 = vmatpush.msra.mxu0 0.0
    %145 = vmatpush.msra.mxu0 0.0
    %146 = vmatpush.msra.mxu0 0.0
    %147 = vmatpush.msra.mxu0 0.0
    %148 = vmatpush.msra.mxu0 0.0
    %149 = vmatpush.msra.mxu0 0.0
    %150 = vmatpush.msra.mxu0 0.0
    %151 = vmatpush.msra.mxu0 0.0
    %152 = vmatpush.msra.mxu0 0.0
    %153 = vmatpush.msra.mxu0 0.0
    %154 = vmatpush.msra.mxu0 0.0
    %155 = vmatpush.msra.mxu0 0.0
    %156 = vmatpush.msra.mxu0 %v139
    %157 = vmatmul.f32.gmra.mxu0 %v33
    %v158 = vpop.f32.mrf.mxu0
    %v159 = vadd.f32 %v136, %v158
    %160 = vmatmul.f32.gmra.mxu0 %v36
    %v161 = vpop.f32.mrf.mxu0
    %v162 = vadd.f32 %v136, %v161
    %163 = vdwg.mxu0
    %v164 = vld [vmem:[%s2] sm:$0x7f]
    %s165 = scalar_lea.vmem %s2, 8
    %v166 = vld [vmem:[%s165] sm:$0x7f]
    %s167 = scalar_lea.vmem %s2, 16
    %v168 = vld [vmem:[%s167] sm:$0x7f]
    %s169 = scalar_lea.vmem %s2, 24
    %v170 = vld [vmem:[%s169] sm:$0x7f]
    %vm171 = vcmask 56320
    %v173 = vsel %vm171, 0.0, 0
    %vm175 = vcmask 1046528
    %v177 = vsel %vm175, %v164, 0
    %179 = vmatpush.msra.mxu0 0.0
    %180 = vmatpush.msra.mxu0 0.0
    %181 = vmatpush.msra.mxu0 0.0
    %182 = vmatpush.msra.mxu0 0.0
    %183 = vmatpush.msra.mxu0 0.0
    %184 = vmatpush.msra.mxu0 0.0
    %185 = vmatpush.msra.mxu0 0.0
    %186 = vmatpush.msra.mxu0 0.0
    %187 = vmatpush.msra.mxu0 0.0
    %188 = vmatpush.msra.mxu0 0.0
    %189 = vmatpush.msra.mxu0 0.0
    %190 = vmatpush.msra.mxu0 0.0
    %191 = vmatpush.msra.mxu0 0.0
    %192 = vmatpush.msra.mxu0 0.0
    %193 = vmatpush.msra.mxu0 0.0
    %194 = vmatpush.msra.mxu0 %v177
    %195 = vmatmul.f32.gmra.mxu0 %v173
    %v196 = vpop.f32.mrf.mxu0
    %v197 = vadd.f32 0.0, %v196
    %198 = vdwg.mxu0
    %v199 = vadd.f32 %v60, %v197
    %v201 = vsel %vm175, %v166, 0
    %203 = vmatpush.msra.mxu0 0.0
    %204 = vmatpush.msra.mxu0 0.0
    %205 = vmatpush.msra.mxu0 0.0
    %206 = vmatpush.msra.mxu0 0.0
    %207 = vmatpush.msra.mxu0 0.0
    %208 = vmatpush.msra.mxu0 0.0
    %209 = vmatpush.msra.mxu0 0.0
    %210 = vmatpush.msra.mxu0 0.0
    %211 = vmatpush.msra.mxu0 0.0
    %212 = vmatpush.msra.mxu0 0.0
    %213 = vmatpush.msra.mxu0 0.0
    %214 = vmatpush.msra.mxu0 0.0
    %215 = vmatpush.msra.mxu0 0.0
    %216 = vmatpush.msra.mxu0 0.0
    %217 = vmatpush.msra.mxu0 0.0
    %218 = vmatpush.msra.mxu0 %v201
    %219 = vmatmul.f32.gmra.mxu0 %v173
    %v220 = vpop.f32.mrf.mxu0
    %v221 = vadd.f32 0.0, %v220
    %222 = vdwg.mxu0
    %v223 = vadd.f32 %v93, %v221
    %v225 = vsel %vm175, %v168, 0
    %227 = vmatpush.msra.mxu0 0.0
    %228 = vmatpush.msra.mxu0 0.0
    %229 = vmatpush.msra.mxu0 0.0
    %230 = vmatpush.msra.mxu0 0.0
    %231 = vmatpush.msra.mxu0 0.0
    %232 = vmatpush.msra.mxu0 0.0
    %233 = vmatpush.msra.mxu0 0.0
    %234 = vmatpush.msra.mxu0 0.0
    %235 = vmatpush.msra.mxu0 0.0
    %236 = vmatpush.msra.mxu0 0.0
    %237 = vmatpush.msra.mxu0 0.0
    %238 = vmatpush.msra.mxu0 0.0
    %239 = vmatpush.msra.mxu0 0.0
    %240 = vmatpush.msra.mxu0 0.0
    %241 = vmatpush.msra.mxu0 0.0
    %242 = vmatpush.msra.mxu0 %v225
    %243 = vmatmul.f32.gmra.mxu0 %v173
    %v244 = vpop.f32.mrf.mxu0
    %v245 = vadd.f32 0.0, %v244
    %246 = vdwg.mxu0
    %v247 = vadd.f32 %v126, %v245
    %v249 = vsel %vm175, %v170, 0
    %251 = vmatpush.msra.mxu0 0.0
    %252 = vmatpush.msra.mxu0 0.0
    %253 = vmatpush.msra.mxu0 0.0
    %254 = vmatpush.msra.mxu0 0.0
    %255 = vmatpush.msra.mxu0 0.0
    %256 = vmatpush.msra.mxu0 0.0
    %257 = vmatpush.msra.mxu0 0.0
    %258 = vmatpush.msra.mxu0 0.0
    %259 = vmatpush.msra.mxu0 0.0
    %260 = vmatpush.msra.mxu0 0.0
    %261 = vmatpush.msra.mxu0 0.0
    %262 = vmatpush.msra.mxu0 0.0
    %263 = vmatpush.msra.mxu0 0.0
    %264 = vmatpush.msra.mxu0 0.0
    %265 = vmatpush.msra.mxu0 0.0
    %266 = vmatpush.msra.mxu0 %v249
    %267 = vmatmul.f32.gmra.mxu0 %v173
    %v268 = vpop.f32.mrf.mxu0
    %v269 = vadd.f32 0.0, %v268
    %270 = vdwg.mxu0
    %v271 = vadd.f32 %v159, %v269
    %v272 = vxor.u32 %v199, 2147483648
    %v273 = vmul.f32 %v272, 1.442695
    %v274 = vpow.pop %v273
    %v275 = vadd.f32 %v274, 1.0
    %v276 = vrcp.pop %v275
    %v277 = vmul.f32 %v275, %v276
    %v278 = vsub.f32 1.0, %v277
    %v279 = vmul.f32 %v276, %v278
    %v280 = vadd.f32 %v276, %v279
    %vm281 = vweird.f32 %v275
    %vm282 = vweird.f32 %v276
    %vm283 = vmor %vm281, %vm282
    %v284 = vsel %vm283, %v276, %v280
    %v285 = vand.u32 2147483647, %v275
    %vm286 = vcmp.eq.f32.partialorder %v285, 8.507059e+37
    %v287 = vand.u32 %v275, 2147483648
    %v288 = vor.u32 1.1754944e-38, %v287
    %v289 = vsel %vm286, %v288, %v284
    %v290 = vmul.f32 1.0, %v289
    %v291 = vxor.u32 %v223, 2147483648
    %v292 = vmul.f32 %v291, 1.442695
    %v293 = vpow.pop %v292
    %v294 = vadd.f32 %v293, 1.0
    %v295 = vrcp.pop %v294
    %v296 = vmul.f32 %v294, %v295
    %v297 = vsub.f32 1.0, %v296
    %v298 = vmul.f32 %v295, %v297
    %v299 = vadd.f32 %v295, %v298
    %vm300 = vweird.f32 %v294
    %vm301 = vweird.f32 %v295
    %vm302 = vmor %vm300, %vm301
    %v303 = vsel %vm302, %v295, %v299
    %v304 = vand.u32 2147483647, %v294
    %vm305 = vcmp.eq.f32.partialorder %v304, 8.507059e+37
    %v306 = vand.u32 %v294, 2147483648
    %v307 = vor.u32 1.1754944e-38, %v306
    %v308 = vsel %vm305, %v307, %v303
    %v309 = vmul.f32 1.0, %v308
    %v310 = vtanh.pop %v247
    %v311 = vxor.u32 %v271, 2147483648
    %v312 = vmul.f32 %v311, 1.442695
    %v313 = vpow.pop %v312
    %v314 = vadd.f32 %v313, 1.0
    %v315 = vrcp.pop %v314
    %v316 = vmul.f32 %v314, %v315
    %v317 = vsub.f32 1.0, %v316
    %v318 = vmul.f32 %v315, %v317
    %v319 = vadd.f32 %v315, %v318
    %vm320 = vweird.f32 %v314
    %vm321 = vweird.f32 %v315
    %vm322 = vmor %vm320, %vm321
    %v323 = vsel %vm322, %v315, %v319
    %v324 = vand.u32 2147483647, %v314
    %vm325 = vcmp.eq.f32.partialorder %v324, 8.507059e+37
    %v326 = vand.u32 %v314, 2147483648
    %v327 = vor.u32 1.1754944e-38, %v326
    %v328 = vsel %vm325, %v327, %v323
    %v329 = vmul.f32 1.0, %v328
    %v330 = vmul.f32 %v309, 0.0
    %v331 = vmul.f32 %v290, %v310
    %v332 = vadd.f32 %v330, %v331
    %v333 = vtanh.pop %v332
    %v334 = vmul.f32 %v329, %v333
    %v336 = vsel %vm171, %v334, 0
    %338 = vmatpush.msra.mxu0 0.0
    %339 = vmatpush.msra.mxu0 0.0
    %340 = vmatpush.msra.mxu0 0.0
    %341 = vmatpush.msra.mxu0 0.0
    %342 = vmatpush.msra.mxu0 0.0
    %343 = vmatpush.msra.mxu0 0.0
    %344 = vmatpush.msra.mxu0 0.0
    %345 = vmatpush.msra.mxu0 0.0
    %346 = vmatpush.msra.mxu0 0.0
    %347 = vmatpush.msra.mxu0 0.0
    %348 = vmatpush.msra.mxu0 0.0
    %349 = vmatpush.msra.mxu0 0.0
    %350 = vmatpush.msra.mxu0 0.0
    %351 = vmatpush.msra.mxu0 0.0
    %352 = vmatpush.msra.mxu0 0.0
    %353 = vmatpush.msra.mxu0 %v177
    %354 = vmatmul.f32.gmra.mxu0 %v336
    %v355 = vpop.f32.mrf.mxu0
    %v356 = vadd.f32 0.0, %v355
    %357 = vdwg.mxu0
    %v359 = vrot.slane %v356, 6
    %v361 = vadd.f32 %v60, %v359
    %362 = vmatpush.msra.mxu0 0.0
    %363 = vmatpush.msra.mxu0 0.0
    %364 = vmatpush.msra.mxu0 0.0
    %365 = vmatpush.msra.mxu0 0.0
    %366 = vmatpush.msra.mxu0 0.0
    %367 = vmatpush.msra.mxu0 0.0
    %368 = vmatpush.msra.mxu0 0.0
    %369 = vmatpush.msra.mxu0 0.0
    %370 = vmatpush.msra.mxu0 0.0
    %371 = vmatpush.msra.mxu0 0.0
    %372 = vmatpush.msra.mxu0 0.0
    %373 = vmatpush.msra.mxu0 0.0
    %374 = vmatpush.msra.mxu0 0.0
    %375 = vmatpush.msra.mxu0 0.0
    %376 = vmatpush.msra.mxu0 0.0
    %377 = vmatpush.msra.mxu0 %v201
    %378 = vmatmul.f32.gmra.mxu0 %v336
    %v379 = vpop.f32.mrf.mxu0
    %v380 = vadd.f32 0.0, %v379
    %381 = vdwg.mxu0
    %v383 = vrot.slane %v380, 6
    %v385 = vadd.f32 %v93, %v383
    %386 = vmatpush.msra.mxu0 0.0
    %387 = vmatpush.msra.mxu0 0.0
    %388 = vmatpush.msra.mxu0 0.0
    %389 = vmatpush.msra.mxu0 0.0
    %390 = vmatpush.msra.mxu0 0.0
    %391 = vmatpush.msra.mxu0 0.0
    %392 = vmatpush.msra.mxu0 0.0
    %393 = vmatpush.msra.mxu0 0.0
    %394 = vmatpush.msra.mxu0 0.0
    %395 = vmatpush.msra.mxu0 0.0
    %396 = vmatpush.msra.mxu0 0.0
    %397 = vmatpush.msra.mxu0 0.0
    %398 = vmatpush.msra.mxu0 0.0
    %399 = vmatpush.msra.mxu0 0.0
    %400 = vmatpush.msra.mxu0 0.0
    %401 = vmatpush.msra.mxu0 %v225
    %402 = vmatmul.f32.gmra.mxu0 %v336
    %v403 = vpop.f32.mrf.mxu0
    %v404 = vadd.f32 0.0, %v403
    %405 = vdwg.mxu0
    %v407 = vrot.slane %v404, 6
    %v409 = vadd.f32 %v126, %v407
    %410 = vmatpush.msra.mxu0 0.0
    %411 = vmatpush.msra.mxu0 0.0
    %412 = vmatpush.msra.mxu0 0.0
    %413 = vmatpush.msra.mxu0 0.0
    %414 = vmatpush.msra.mxu0 0.0
    %415 = vmatpush.msra.mxu0 0.0
    %416 = vmatpush.msra.mxu0 0.0
    %417 = vmatpush.msra.mxu0 0.0
    %418 = vmatpush.msra.mxu0 0.0
    %419 = vmatpush.msra.mxu0 0.0
    %420 = vmatpush.msra.mxu0 0.0
    %421 = vmatpush.msra.mxu0 0.0
    %422 = vmatpush.msra.mxu0 0.0
    %423 = vmatpush.msra.mxu0 0.0
    %424 = vmatpush.msra.mxu0 0.0
    %425 = vmatpush.msra.mxu0 %v249
    %426 = vmatmul.f32.gmra.mxu0 %v336
    %v427 = vpop.f32.mrf.mxu0
    %v428 = vadd.f32 0.0, %v427
    %429 = vdwg.mxu0
    %v431 = vrot.slane %v428, 6
    %v433 = vadd.f32 %v159, %v431
    %v434 = vxor.u32 %v361, 2147483648
    %v435 = vmul.f32 %v434, 1.442695
    %v436 = vpow.pop %v435
    %v437 = vadd.f32 %v436, 1.0
    %v438 = vrcp.pop %v437
    %v439 = vmul.f32 %v437, %v438
    %v440 = vsub.f32 1.0, %v439
    %v441 = vmul.f32 %v438, %v440
    %v442 = vadd.f32 %v438, %v441
    %vm443 = vweird.f32 %v437
    %vm444 = vweird.f32 %v438
    %vm445 = vmor %vm443, %vm444
    %v446 = vsel %vm445, %v438, %v442
    %v447 = vand.u32 2147483647, %v437
    %vm448 = vcmp.eq.f32.partialorder %v447, 8.507059e+37
    %v449 = vand.u32 %v437, 2147483648
    %v450 = vor.u32 1.1754944e-38, %v449
    %v451 = vsel %vm448, %v450, %v446
    %v452 = vmul.f32 1.0, %v451
    %v453 = vxor.u32 %v385, 2147483648
    %v454 = vmul.f32 %v453, 1.442695
    %v455 = vpow.pop %v454
    %v456 = vadd.f32 %v455, 1.0
    %v457 = vrcp.pop %v456
    %v458 = vmul.f32 %v456, %v457
    %v459 = vsub.f32 1.0, %v458
    %v460 = vmul.f32 %v457, %v459
    %v461 = vadd.f32 %v457, %v460
    %vm462 = vweird.f32 %v456
    %vm463 = vweird.f32 %v457
    %vm464 = vmor %vm462, %vm463
    %v465 = vsel %vm464, %v457, %v461
    %v466 = vand.u32 2147483647, %v456
    %vm467 = vcmp.eq.f32.partialorder %v466, 8.507059e+37
    %v468 = vand.u32 %v456, 2147483648
    %v469 = vor.u32 1.1754944e-38, %v468
    %v470 = vsel %vm467, %v469, %v465
    %v471 = vmul.f32 1.0, %v470
    %v472 = vtanh.pop %v409
    %v473 = vxor.u32 %v433, 2147483648
    %v474 = vmul.f32 %v473, 1.442695
    %v475 = vpow.pop %v474
    %v476 = vadd.f32 %v475, 1.0
    %v477 = vrcp.pop %v476
    %v478 = vmul.f32 %v476, %v477
    %v479 = vsub.f32 1.0, %v478
    %v480 = vmul.f32 %v477, %v479
    %v481 = vadd.f32 %v477, %v480
    %vm482 = vweird.f32 %v476
    %vm483 = vweird.f32 %v477
    %vm484 = vmor %vm482, %vm483
    %v485 = vsel %vm484, %v477, %v481
    %v486 = vand.u32 2147483647, %v476
    %vm487 = vcmp.eq.f32.partialorder %v486, 8.507059e+37
    %v488 = vand.u32 %v476, 2147483648
    %v489 = vor.u32 1.1754944e-38, %v488
    %v490 = vsel %vm487, %v489, %v485
    %v491 = vmul.f32 1.0, %v490
    %v493 = vrot.slane %v332, 6
    %v495 = vmul.f32 %v471, %v493
    %v496 = vmul.f32 %v452, %v472
    %v497 = vadd.f32 %v495, %v496
    %v498 = vtanh.pop %v497
    %v499 = vmul.f32 %v491, %v498
    %v501 = vrot.slane %v499, 2
    %v502 = vsel %vm171, %v501, 0
    %504 = vmatpush.msra.mxu0 0.0
    %505 = vmatpush.msra.mxu0 0.0
    %506 = vmatpush.msra.mxu0 0.0
    %507 = vmatpush.msra.mxu0 0.0
    %508 = vmatpush.msra.mxu0 0.0
    %509 = vmatpush.msra.mxu0 0.0
    %510 = vmatpush.msra.mxu0 0.0
    %511 = vmatpush.msra.mxu0 0.0
    %512 = vmatpush.msra.mxu0 0.0
    %513 = vmatpush.msra.mxu0 0.0
    %514 = vmatpush.msra.mxu0 0.0
    %515 = vmatpush.msra.mxu0 0.0
    %516 = vmatpush.msra.mxu0 0.0
    %517 = vmatpush.msra.mxu0 0.0
    %518 = vmatpush.msra.mxu0 0.0
    %519 = vmatpush.msra.mxu0 %v177
    %520 = vmatmul.f32.gmra.mxu0 %v502
    %v521 = vpop.f32.mrf.mxu0
    %v522 = vadd.f32 0.0, %v521
    %523 = vdwg.mxu0
    %v525 = vrot.slane %v522, 4
    %v527 = vadd.f32 %v60, %v525
    %528 = vmatpush.msra.mxu0 0.0
    %529 = vmatpush.msra.mxu0 0.0
    %530 = vmatpush.msra.mxu0 0.0
    %531 = vmatpush.msra.mxu0 0.0
    %532 = vmatpush.msra.mxu0 0.0
    %533 = vmatpush.msra.mxu0 0.0
    %534 = vmatpush.msra.mxu0 0.0
    %535 = vmatpush.msra.mxu0 0.0
    %536 = vmatpush.msra.mxu0 0.0
    %537 = vmatpush.msra.mxu0 0.0
    %538 = vmatpush.msra.mxu0 0.0
    %539 = vmatpush.msra.mxu0 0.0
    %540 = vmatpush.msra.mxu0 0.0
    %541 = vmatpush.msra.mxu0 0.0
    %542 = vmatpush.msra.mxu0 0.0
    %543 = vmatpush.msra.mxu0 %v201
    %544 = vmatmul.f32.gmra.mxu0 %v502
    %v545 = vpop.f32.mrf.mxu0
    %v546 = vadd.f32 0.0, %v545
    %547 = vdwg.mxu0
    %v549 = vrot.slane %v546, 4
    %v551 = vadd.f32 %v93, %v549
    %552 = vmatpush.msra.mxu0 0.0
    %553 = vmatpush.msra.mxu0 0.0
    %554 = vmatpush.msra.mxu0 0.0
    %555 = vmatpush.msra.mxu0 0.0
    %556 = vmatpush.msra.mxu0 0.0
    %557 = vmatpush.msra.mxu0 0.0
    %558 = vmatpush.msra.mxu0 0.0
    %559 = vmatpush.msra.mxu0 0.0
    %560 = vmatpush.msra.mxu0 0.0
    %561 = vmatpush.msra.mxu0 0.0
    %562 = vmatpush.msra.mxu0 0.0
    %563 = vmatpush.msra.mxu0 0.0
    %564 = vmatpush.msra.mxu0 0.0
    %565 = vmatpush.msra.mxu0 0.0
    %566 = vmatpush.msra.mxu0 0.0
    %567 = vmatpush.msra.mxu0 %v225
    %568 = vmatmul.f32.gmra.mxu0 %v502
    %v569 = vpop.f32.mrf.mxu0
    %v570 = vadd.f32 0.0, %v569
    %571 = vdwg.mxu0
    %v573 = vrot.slane %v570, 4
    %v575 = vadd.f32 %v126, %v573
    %576 = vmatpush.msra.mxu0 0.0
    %577 = vmatpush.msra.mxu0 0.0
    %578 = vmatpush.msra.mxu0 0.0
    %579 = vmatpush.msra.mxu0 0.0
    %580 = vmatpush.msra.mxu0 0.0
    %581 = vmatpush.msra.mxu0 0.0
    %582 = vmatpush.msra.mxu0 0.0
    %583 = vmatpush.msra.mxu0 0.0
    %584 = vmatpush.msra.mxu0 0.0
    %585 = vmatpush.msra.mxu0 0.0
    %586 = vmatpush.msra.mxu0 0.0
    %587 = vmatpush.msra.mxu0 0.0
    %588 = vmatpush.msra.mxu0 0.0
    %589 = vmatpush.msra.mxu0 0.0
    %590 = vmatpush.msra.mxu0 0.0
    %591 = vmatpush.msra.mxu0 %v249
    %592 = vmatmul.f32.gmra.mxu0 %v502
    %v593 = vpop.f32.mrf.mxu0
    %v594 = vadd.f32 0.0, %v593
    %595 = vdwg.mxu0
    %v597 = vrot.slane %v594, 4
    %v599 = vadd.f32 %v159, %v597
    %v600 = vxor.u32 %v527, 2147483648
    %v601 = vmul.f32 %v600, 1.442695
    %v602 = vpow.pop %v601
    %v603 = vadd.f32 %v602, 1.0
    %v604 = vrcp.pop %v603
    %v605 = vmul.f32 %v603, %v604
    %v606 = vsub.f32 1.0, %v605
    %v607 = vmul.f32 %v604, %v606
    %v608 = vadd.f32 %v604, %v607
    %vm609 = vweird.f32 %v603
    %vm610 = vweird.f32 %v604
    %vm611 = vmor %vm609, %vm610
    %v612 = vsel %vm611, %v604, %v608
    %v613 = vand.u32 2147483647, %v603
    %vm614 = vcmp.eq.f32.partialorder %v613, 8.507059e+37
    %v615 = vand.u32 %v603, 2147483648
    %v616 = vor.u32 1.1754944e-38, %v615
    %v617 = vsel %vm614, %v616, %v612
    %v618 = vmul.f32 1.0, %v617
    %v619 = vxor.u32 %v551, 2147483648
    %v620 = vmul.f32 %v619, 1.442695
    %v621 = vpow.pop %v620
    %v622 = vadd.f32 %v621, 1.0
    %v623 = vrcp.pop %v622
    %v624 = vmul.f32 %v622, %v623
    %v625 = vsub.f32 1.0, %v624
    %v626 = vmul.f32 %v623, %v625
    %v627 = vadd.f32 %v623, %v626
    %vm628 = vweird.f32 %v622
    %vm629 = vweird.f32 %v623
    %vm630 = vmor %vm628, %vm629
    %v631 = vsel %vm630, %v623, %v627
    %v632 = vand.u32 2147483647, %v622
    %vm633 = vcmp.eq.f32.partialorder %v632, 8.507059e+37
    %v634 = vand.u32 %v622, 2147483648
    %v635 = vor.u32 1.1754944e-38, %v634
    %v636 = vsel %vm633, %v635, %v631
    %v637 = vmul.f32 1.0, %v636
    %v638 = vtanh.pop %v575
    %v639 = vxor.u32 %v599, 2147483648
    %v640 = vmul.f32 %v639, 1.442695
    %v641 = vpow.pop %v640
    %v642 = vadd.f32 %v641, 1.0
    %v643 = vrcp.pop %v642
    %v644 = vmul.f32 %v642, %v643
    %v645 = vsub.f32 1.0, %v644
    %v646 = vmul.f32 %v643, %v645
    %v647 = vadd.f32 %v643, %v646
    %vm648 = vweird.f32 %v642
    %vm649 = vweird.f32 %v643
    %vm650 = vmor %vm648, %vm649
    %v651 = vsel %vm650, %v643, %v647
    %v652 = vand.u32 2147483647, %v642
    %vm653 = vcmp.eq.f32.partialorder %v652, 8.507059e+37
    %v654 = vand.u32 %v642, 2147483648
    %v655 = vor.u32 1.1754944e-38, %v654
    %v656 = vsel %vm653, %v655, %v651
    %v657 = vmul.f32 1.0, %v656
    %v659 = vrot.slane %v497, 6
    %v661 = vmul.f32 %v637, %v659
    %v662 = vmul.f32 %v618, %v638
    %v663 = vadd.f32 %v661, %v662
    %v664 = vtanh.pop %v663
    %v665 = vmul.f32 %v657, %v664
    %v667 = vrot.slane %v665, 4
    %v668 = vsel %vm171, %v667, 0
    %670 = vmatpush.msra.mxu0 0.0
    %671 = vmatpush.msra.mxu0 0.0
    %672 = vmatpush.msra.mxu0 0.0
    %673 = vmatpush.msra.mxu0 0.0
    %674 = vmatpush.msra.mxu0 0.0
    %675 = vmatpush.msra.mxu0 0.0
    %676 = vmatpush.msra.mxu0 0.0
    %677 = vmatpush.msra.mxu0 0.0
    %678 = vmatpush.msra.mxu0 0.0
    %679 = vmatpush.msra.mxu0 0.0
    %680 = vmatpush.msra.mxu0 0.0
    %681 = vmatpush.msra.mxu0 0.0
    %682 = vmatpush.msra.mxu0 0.0
    %683 = vmatpush.msra.mxu0 0.0
    %684 = vmatpush.msra.mxu0 0.0
    %685 = vmatpush.msra.mxu0 %v177
    %686 = vmatmul.f32.gmra.mxu0 %v668
    %v687 = vpop.f32.mrf.mxu0
    %v688 = vadd.f32 0.0, %v687
    %689 = vdwg.mxu0
    %v691 = vrot.slane %v688, 2
    %v693 = vadd.f32 %v60, %v691
    %694 = vmatpush.msra.mxu0 0.0
    %695 = vmatpush.msra.mxu0 0.0
    %696 = vmatpush.msra.mxu0 0.0
    %697 = vmatpush.msra.mxu0 0.0
    %698 = vmatpush.msra.mxu0 0.0
    %699 = vmatpush.msra.mxu0 0.0
    %700 = vmatpush.msra.mxu0 0.0
    %701 = vmatpush.msra.mxu0 0.0
    %702 = vmatpush.msra.mxu0 0.0
    %703 = vmatpush.msra.mxu0 0.0
    %704 = vmatpush.msra.mxu0 0.0
    %705 = vmatpush.msra.mxu0 0.0
    %706 = vmatpush.msra.mxu0 0.0
    %707 = vmatpush.msra.mxu0 0.0
    %708 = vmatpush.msra.mxu0 0.0
    %709 = vmatpush.msra.mxu0 %v201
    %710 = vmatmul.f32.gmra.mxu0 %v668
    %v711 = vpop.f32.mrf.mxu0
    %v712 = vadd.f32 0.0, %v711
    %713 = vdwg.mxu0
    %v715 = vrot.slane %v712, 2
    %v717 = vadd.f32 %v93, %v715
    %718 = vmatpush.msra.mxu0 0.0
    %719 = vmatpush.msra.mxu0 0.0
    %720 = vmatpush.msra.mxu0 0.0
    %721 = vmatpush.msra.mxu0 0.0
    %722 = vmatpush.msra.mxu0 0.0
    %723 = vmatpush.msra.mxu0 0.0
    %724 = vmatpush.msra.mxu0 0.0
    %725 = vmatpush.msra.mxu0 0.0
    %726 = vmatpush.msra.mxu0 0.0
    %727 = vmatpush.msra.mxu0 0.0
    %728 = vmatpush.msra.mxu0 0.0
    %729 = vmatpush.msra.mxu0 0.0
    %730 = vmatpush.msra.mxu0 0.0
    %731 = vmatpush.msra.mxu0 0.0
    %732 = vmatpush.msra.mxu0 0.0
    %733 = vmatpush.msra.mxu0 %v225
    %734 = vmatmul.f32.gmra.mxu0 %v668
    %v735 = vpop.f32.mrf.mxu0
    %v736 = vadd.f32 0.0, %v735
    %737 = vdwg.mxu0
    %v739 = vrot.slane %v736, 2
    %v741 = vadd.f32 %v126, %v739
    %742 = vmatpush.msra.mxu0 0.0
    %743 = vmatpush.msra.mxu0 0.0
    %744 = vmatpush.msra.mxu0 0.0
    %745 = vmatpush.msra.mxu0 0.0
    %746 = vmatpush.msra.mxu0 0.0
    %747 = vmatpush.msra.mxu0 0.0
    %748 = vmatpush.msra.mxu0 0.0
    %749 = vmatpush.msra.mxu0 0.0
    %750 = vmatpush.msra.mxu0 0.0
    %751 = vmatpush.msra.mxu0 0.0
    %752 = vmatpush.msra.mxu0 0.0
    %753 = vmatpush.msra.mxu0 0.0
    %754 = vmatpush.msra.mxu0 0.0
    %755 = vmatpush.msra.mxu0 0.0
    %756 = vmatpush.msra.mxu0 0.0
    %757 = vmatpush.msra.mxu0 %v249
    %758 = vmatmul.f32.gmra.mxu0 %v668
    %v759 = vpop.f32.mrf.mxu0
    %v760 = vadd.f32 0.0, %v759
    %761 = vdwg.mxu0
    %v763 = vrot.slane %v760, 2
    %v765 = vadd.f32 %v159, %v763
    %v766 = vxor.u32 %v693, 2147483648
    %v767 = vmul.f32 %v766, 1.442695
    %v768 = vpow.pop %v767
    %v769 = vadd.f32 %v768, 1.0
    %v770 = vrcp.pop %v769
    %v771 = vmul.f32 %v769, %v770
    %v772 = vsub.f32 1.0, %v771
    %v773 = vmul.f32 %v770, %v772
    %v774 = vadd.f32 %v770, %v773
    %vm775 = vweird.f32 %v769
    %vm776 = vweird.f32 %v770
    %vm777 = vmor %vm775, %vm776
    %v778 = vsel %vm777, %v770, %v774
    %v779 = vand.u32 2147483647, %v769
    %vm780 = vcmp.eq.f32.partialorder %v779, 8.507059e+37
    %v781 = vand.u32 %v769, 2147483648
    %v782 = vor.u32 1.1754944e-38, %v781
    %v783 = vsel %vm780, %v782, %v778
    %v784 = vmul.f32 1.0, %v783
    %v785 = vxor.u32 %v717, 2147483648
    %v786 = vmul.f32 %v785, 1.442695
    %v787 = vpow.pop %v786
    %v788 = vadd.f32 %v787, 1.0
    %v789 = vrcp.pop %v788
    %v790 = vmul.f32 %v788, %v789
    %v791 = vsub.f32 1.0, %v790
    %v792 = vmul.f32 %v789, %v791
    %v793 = vadd.f32 %v789, %v792
    %vm794 = vweird.f32 %v788
    %vm795 = vweird.f32 %v789
    %vm796 = vmor %vm794, %vm795
    %v797 = vsel %vm796, %v789, %v793
    %v798 = vand.u32 2147483647, %v788
    %vm799 = vcmp.eq.f32.partialorder %v798, 8.507059e+37
    %v800 = vand.u32 %v788, 2147483648
    %v801 = vor.u32 1.1754944e-38, %v800
    %v802 = vsel %vm799, %v801, %v797
    %v803 = vmul.f32 1.0, %v802
    %v804 = vtanh.pop %v741
    %v805 = vxor.u32 %v765, 2147483648
    %v806 = vmul.f32 %v805, 1.442695
    %v807 = vpow.pop %v806
    %v808 = vadd.f32 %v807, 1.0
    %v809 = vrcp.pop %v808
    %v810 = vmul.f32 %v808, %v809
    %v811 = vsub.f32 1.0, %v810
    %v812 = vmul.f32 %v809, %v811
    %v813 = vadd.f32 %v809, %v812
    %vm814 = vweird.f32 %v808
    %vm815 = vweird.f32 %v809
    %vm816 = vmor %vm814, %vm815
    %v817 = vsel %vm816, %v809, %v813
    %v818 = vand.u32 2147483647, %v808
    %vm819 = vcmp.eq.f32.partialorder %v818, 8.507059e+37
    %v820 = vand.u32 %v808, 2147483648
    %v821 = vor.u32 1.1754944e-38, %v820
    %v822 = vsel %vm819, %v821, %v817
    %v823 = vmul.f32 1.0, %v822
    %v825 = vrot.slane %v663, 6
    %v827 = vmul.f32 %v803, %v825
    %v828 = vmul.f32 %v784, %v804
    %v829 = vadd.f32 %v827, %v828
    %v830 = vtanh.pop %v829
    %v831 = vmul.f32 %v823, %v830
    %v833 = vrot.slane %v831, 6
    %v834 = vsel %vm171, %v833, 0
    %836 = vmatpush.msra.mxu0 0.0
    %837 = vmatpush.msra.mxu0 0.0
    %838 = vmatpush.msra.mxu0 0.0
    %839 = vmatpush.msra.mxu0 0.0
    %840 = vmatpush.msra.mxu0 0.0
    %841 = vmatpush.msra.mxu0 0.0
    %842 = vmatpush.msra.mxu0 0.0
    %843 = vmatpush.msra.mxu0 0.0
    %844 = vmatpush.msra.mxu0 0.0
    %845 = vmatpush.msra.mxu0 0.0
    %846 = vmatpush.msra.mxu0 0.0
    %847 = vmatpush.msra.mxu0 0.0
    %848 = vmatpush.msra.mxu0 0.0
    %849 = vmatpush.msra.mxu0 0.0
    %850 = vmatpush.msra.mxu0 0.0
    %851 = vmatpush.msra.mxu0 %v177
    %852 = vmatmul.f32.gmra.mxu0 %v834
    %v853 = vpop.f32.mrf.mxu0
    %v854 = vadd.f32 0.0, %v853
    %855 = vdwg.mxu0
    %v856 = vadd.f32 %v63, %v854
    %857 = vmatpush.msra.mxu0 0.0
    %858 = vmatpush.msra.mxu0 0.0
    %859 = vmatpush.msra.mxu0 0.0
    %860 = vmatpush.msra.mxu0 0.0
    %861 = vmatpush.msra.mxu0 0.0
    %862 = vmatpush.msra.mxu0 0.0
    %863 = vmatpush.msra.mxu0 0.0
    %864 = vmatpush.msra.mxu0 0.0
    %865 = vmatpush.msra.mxu0 0.0
    %866 = vmatpush.msra.mxu0 0.0
    %867 = vmatpush.msra.mxu0 0.0
    %868 = vmatpush.msra.mxu0 0.0
    %869 = vmatpush.msra.mxu0 0.0
    %870 = vmatpush.msra.mxu0 0.0
    %871 = vmatpush.msra.mxu0 0.0
    %872 = vmatpush.msra.mxu0 %v201
    %873 = vmatmul.f32.gmra.mxu0 %v834
    %v874 = vpop.f32.mrf.mxu0
    %v875 = vadd.f32 0.0, %v874
    %876 = vdwg.mxu0
    %v877 = vadd.f32 %v96, %v875
    %878 = vmatpush.msra.mxu0 0.0
    %879 = vmatpush.msra.mxu0 0.0
    %880 = vmatpush.msra.mxu0 0.0
    %881 = vmatpush.msra.mxu0 0.0
    %882 = vmatpush.msra.mxu0 0.0
    %883 = vmatpush.msra.mxu0 0.0
    %884 = vmatpush.msra.mxu0 0.0
    %885 = vmatpush.msra.mxu0 0.0
    %886 = vmatpush.msra.mxu0 0.0
    %887 = vmatpush.msra.mxu0 0.0
    %888 = vmatpush.msra.mxu0 0.0
    %889 = vmatpush.msra.mxu0 0.0
    %890 = vmatpush.msra.mxu0 0.0
    %891 = vmatpush.msra.mxu0 0.0
    %892 = vmatpush.msra.mxu0 0.0
    %893 = vmatpush.msra.mxu0 %v225
    %894 = vmatmul.f32.gmra.mxu0 %v834
    %v895 = vpop.f32.mrf.mxu0
    %v896 = vadd.f32 0.0, %v895
    %897 = vdwg.mxu0
    %v898 = vadd.f32 %v129, %v896
    %899 = vmatpush.msra.mxu0 0.0
    %900 = vmatpush.msra.mxu0 0.0
    %901 = vmatpush.msra.mxu0 0.0
    %902 = vmatpush.msra.mxu0 0.0
    %903 = vmatpush.msra.mxu0 0.0
    %904 = vmatpush.msra.mxu0 0.0
    %905 = vmatpush.msra.mxu0 0.0
    %906 = vmatpush.msra.mxu0 0.0
    %907 = vmatpush.msra.mxu0 0.0
    %908 = vmatpush.msra.mxu0 0.0
    %909 = vmatpush.msra.mxu0 0.0
    %910 = vmatpush.msra.mxu0 0.0
    %911 = vmatpush.msra.mxu0 0.0
    %912 = vmatpush.msra.mxu0 0.0
    %913 = vmatpush.msra.mxu0 0.0
    %914 = vmatpush.msra.mxu0 %v249
    %915 = vmatmul.f32.gmra.mxu0 %v834
    %v916 = vpop.f32.mrf.mxu0
    %v917 = vadd.f32 0.0, %v916
    %918 = vdwg.mxu0
    %v919 = vadd.f32 %v162, %v917
    %v920 = vxor.u32 %v856, 2147483648
    %v921 = vmul.f32 %v920, 1.442695
    %v922 = vpow.pop %v921
    %v923 = vadd.f32 %v922, 1.0
    %v924 = vrcp.pop %v923
    %v925 = vmul.f32 %v923, %v924
    %v926 = vsub.f32 1.0, %v925
    %v927 = vmul.f32 %v924, %v926
    %v928 = vadd.f32 %v924, %v927
    %vm929 = vweird.f32 %v923
    %vm930 = vweird.f32 %v924
    %vm931 = vmor %vm929, %vm930
    %v932 = vsel %vm931, %v924, %v928
    %v933 = vand.u32 2147483647, %v923
    %vm934 = vcmp.eq.f32.partialorder %v933, 8.507059e+37
    %v935 = vand.u32 %v923, 2147483648
    %v936 = vor.u32 1.1754944e-38, %v935
    %v937 = vsel %vm934, %v936, %v932
    %v938 = vmul.f32 1.0, %v937
    %v939 = vxor.u32 %v877, 2147483648
    %v940 = vmul.f32 %v939, 1.442695
    %v941 = vpow.pop %v940
    %v942 = vadd.f32 %v941, 1.0
    %v943 = vrcp.pop %v942
    %v944 = vmul.f32 %v942, %v943
    %v945 = vsub.f32 1.0, %v944
    %v946 = vmul.f32 %v943, %v945
    %v947 = vadd.f32 %v943, %v946
    %vm948 = vweird.f32 %v942
    %vm949 = vweird.f32 %v943
    %vm950 = vmor %vm948, %vm949
    %v951 = vsel %vm950, %v943, %v947
    %v952 = vand.u32 2147483647, %v942
    %vm953 = vcmp.eq.f32.partialorder %v952, 8.507059e+37
    %v954 = vand.u32 %v942, 2147483648
    %v955 = vor.u32 1.1754944e-38, %v954
    %v956 = vsel %vm953, %v955, %v951
    %v957 = vmul.f32 1.0, %v956
    %v958 = vtanh.pop %v898
    %v959 = vxor.u32 %v919, 2147483648
    %v960 = vmul.f32 %v959, 1.442695
    %v961 = vpow.pop %v960
    %v962 = vadd.f32 %v961, 1.0
    %v963 = vrcp.pop %v962
    %v964 = vmul.f32 %v962, %v963
    %v965 = vsub.f32 1.0, %v964
    %v966 = vmul.f32 %v963, %v965
    %v967 = vadd.f32 %v963, %v966
    %vm968 = vweird.f32 %v962
    %vm969 = vweird.f32 %v963
    %vm970 = vmor %vm968, %vm969
    %v971 = vsel %vm970, %v963, %v967
    %v972 = vand.u32 2147483647, %v962
    %vm973 = vcmp.eq.f32.partialorder %v972, 8.507059e+37
    %v974 = vand.u32 %v962, 2147483648
    %v975 = vor.u32 1.1754944e-38, %v974
    %v976 = vsel %vm973, %v975, %v971
    %v977 = vmul.f32 1.0, %v976
    %v979 = vrot.slane %v829, 6
    %v981 = vmul.f32 %v957, %v979
    %v982 = vmul.f32 %v938, %v958
    %v983 = vadd.f32 %v981, %v982
    %v984 = vtanh.pop %v983
    %v985 = vmul.f32 %v977, %v984
    %v987 = vsel %vm171, %v985, 0
    %989 = vmatpush.msra.mxu0 0.0
    %990 = vmatpush.msra.mxu0 0.0
    %991 = vmatpush.msra.mxu0 0.0
    %992 = vmatpush.msra.mxu0 0.0
    %993 = vmatpush.msra.mxu0 0.0
    %994 = vmatpush.msra.mxu0 0.0
    %995 = vmatpush.msra.mxu0 0.0
    %996 = vmatpush.msra.mxu0 0.0
    %997 = vmatpush.msra.mxu0 0.0
    %998 = vmatpush.msra.mxu0 0.0
    %999 = vmatpush.msra.mxu0 0.0
    %1000 = vmatpush.msra.mxu0 0.0
    %1001 = vmatpush.msra.mxu0 0.0
    %1002 = vmatpush.msra.mxu0 0.0
    %1003 = vmatpush.msra.mxu0 0.0
    %1004 = vmatpush.msra.mxu0 %v177
    %1005 = vmatmul.f32.gmra.mxu0 %v987
    %v1006 = vpop.f32.mrf.mxu0
    %v1007 = vadd.f32 0.0, %v1006
    %1008 = vdwg.mxu0
    %v1010 = vrot.slane %v1007, 6
    %v1012 = vadd.f32 %v63, %v1010
    %1013 = vmatpush.msra.mxu0 0.0
    %1014 = vmatpush.msra.mxu0 0.0
    %1015 = vmatpush.msra.mxu0 0.0
    %1016 = vmatpush.msra.mxu0 0.0
    %1017 = vmatpush.msra.mxu0 0.0
    %1018 = vmatpush.msra.mxu0 0.0
    %1019 = vmatpush.msra.mxu0 0.0
    %1020 = vmatpush.msra.mxu0 0.0
    %1021 = vmatpush.msra.mxu0 0.0
    %1022 = vmatpush.msra.mxu0 0.0
    %1023 = vmatpush.msra.mxu0 0.0
    %1024 = vmatpush.msra.mxu0 0.0
    %1025 = vmatpush.msra.mxu0 0.0
    %1026 = vmatpush.msra.mxu0 0.0
    %1027 = vmatpush.msra.mxu0 0.0
    %1028 = vmatpush.msra.mxu0 %v201
    %1029 = vmatmul.f32.gmra.mxu0 %v987
    %v1030 = vpop.f32.mrf.mxu0
    %v1031 = vadd.f32 0.0, %v1030
    %1032 = vdwg.mxu0
    %v1034 = vrot.slane %v1031, 6
    %v1036 = vadd.f32 %v96, %v1034
    %1037 = vmatpush.msra.mxu0 0.0
    %1038 = vmatpush.msra.mxu0 0.0
    %1039 = vmatpush.msra.mxu0 0.0
    %1040 = vmatpush.msra.mxu0 0.0
    %1041 = vmatpush.msra.mxu0 0.0
    %1042 = vmatpush.msra.mxu0 0.0
    %1043 = vmatpush.msra.mxu0 0.0
    %1044 = vmatpush.msra.mxu0 0.0
    %1045 = vmatpush.msra.mxu0 0.0
    %1046 = vmatpush.msra.mxu0 0.0
    %1047 = vmatpush.msra.mxu0 0.0
    %1048 = vmatpush.msra.mxu0 0.0
    %1049 = vmatpush.msra.mxu0 0.0
    %1050 = vmatpush.msra.mxu0 0.0
    %1051 = vmatpush.msra.mxu0 0.0
    %1052 = vmatpush.msra.mxu0 %v225
    %1053 = vmatmul.f32.gmra.mxu0 %v987
    %v1054 = vpop.f32.mrf.mxu0
    %v1055 = vadd.f32 0.0, %v1054
    %1056 = vdwg.mxu0
    %v1058 = vrot.slane %v1055, 6
    %v1060 = vadd.f32 %v129, %v1058
    %1061 = vmatpush.msra.mxu0 0.0
    %1062 = vmatpush.msra.mxu0 0.0
    %1063 = vmatpush.msra.mxu0 0.0
    %1064 = vmatpush.msra.mxu0 0.0
    %1065 = vmatpush.msra.mxu0 0.0
    %1066 = vmatpush.msra.mxu0 0.0
    %1067 = vmatpush.msra.mxu0 0.0
    %1068 = vmatpush.msra.mxu0 0.0
    %1069 = vmatpush.msra.mxu0 0.0
    %1070 = vmatpush.msra.mxu0 0.0
    %1071 = vmatpush.msra.mxu0 0.0
    %1072 = vmatpush.msra.mxu0 0.0
    %1073 = vmatpush.msra.mxu0 0.0
    %1074 = vmatpush.msra.mxu0 0.0
    %1075 = vmatpush.msra.mxu0 0.0
    %1076 = vmatpush.msra.mxu0 %v249
    %1077 = vmatmul.f32.gmra.mxu0 %v987
    %v1078 = vpop.f32.mrf.mxu0
    %v1079 = vadd.f32 0.0, %v1078
    %1080 = vdwg.mxu0
    %v1082 = vrot.slane %v1079, 6
    %v1084 = vadd.f32 %v162, %v1082
    %v1085 = vxor.u32 %v1012, 2147483648
    %v1086 = vmul.f32 %v1085, 1.442695
    %v1087 = vpow.pop %v1086
    %v1088 = vadd.f32 %v1087, 1.0
    %v1089 = vrcp.pop %v1088
    %v1090 = vmul.f32 %v1088, %v1089
    %v1091 = vsub.f32 1.0, %v1090
    %v1092 = vmul.f32 %v1089, %v1091
    %v1093 = vadd.f32 %v1089, %v1092
    %vm1094 = vweird.f32 %v1088
    %vm1095 = vweird.f32 %v1089
    %vm1096 = vmor %vm1094, %vm1095
    %v1097 = vsel %vm1096, %v1089, %v1093
    %v1098 = vand.u32 2147483647, %v1088
    %vm1099 = vcmp.eq.f32.partialorder %v1098, 8.507059e+37
    %v1100 = vand.u32 %v1088, 2147483648
    %v1101 = vor.u32 1.1754944e-38, %v1100
    %v1102 = vsel %vm1099, %v1101, %v1097
    %v1103 = vmul.f32 1.0, %v1102
    %v1104 = vxor.u32 %v1036, 2147483648
    %v1105 = vmul.f32 %v1104, 1.442695
    %v1106 = vpow.pop %v1105
    %v1107 = vadd.f32 %v1106, 1.0
    %v1108 = vrcp.pop %v1107
    %v1109 = vmul.f32 %v1107, %v1108
    %v1110 = vsub.f32 1.0, %v1109
    %v1111 = vmul.f32 %v1108, %v1110
    %v1112 = vadd.f32 %v1108, %v1111
    %vm1113 = vweird.f32 %v1107
    %vm1114 = vweird.f32 %v1108
    %vm1115 = vmor %vm1113, %vm1114
    %v1116 = vsel %vm1115, %v1108, %v1112
    %v1117 = vand.u32 2147483647, %v1107
    %vm1118 = vcmp.eq.f32.partialorder %v1117, 8.507059e+37
    %v1119 = vand.u32 %v1107, 2147483648
    %v1120 = vor.u32 1.1754944e-38, %v1119
    %v1121 = vsel %vm1118, %v1120, %v1116
    %v1122 = vmul.f32 1.0, %v1121
    %v1123 = vtanh.pop %v1060
    %v1124 = vxor.u32 %v1084, 2147483648
    %v1125 = vmul.f32 %v1124, 1.442695
    %v1126 = vpow.pop %v1125
    %v1127 = vadd.f32 %v1126, 1.0
    %v1128 = vrcp.pop %v1127
    %v1129 = vmul.f32 %v1127, %v1128
    %v1130 = vsub.f32 1.0, %v1129
    %v1131 = vmul.f32 %v1128, %v1130
    %v1132 = vadd.f32 %v1128, %v1131
    %vm1133 = vweird.f32 %v1127
    %vm1134 = vweird.f32 %v1128
    %vm1135 = vmor %vm1133, %vm1134
    %v1136 = vsel %vm1135, %v1128, %v1132
    %v1137 = vand.u32 2147483647, %v1127
    %vm1138 = vcmp.eq.f32.partialorder %v1137, 8.507059e+37
    %v1139 = vand.u32 %v1127, 2147483648
    %v1140 = vor.u32 1.1754944e-38, %v1139
    %v1141 = vsel %vm1138, %v1140, %v1136
    %v1142 = vmul.f32 1.0, %v1141
    %v1144 = vrot.slane %v983, 6
    %v1146 = vmul.f32 %v1122, %v1144
    %v1147 = vmul.f32 %v1103, %v1123
    %v1148 = vadd.f32 %v1146, %v1147
    %v1149 = vtanh.pop %v1148
    %v1150 = vmul.f32 %v1142, %v1149
    %v1152 = vrot.slane %v1150, 2
    %v1153 = vsel %vm171, %v1152, 0
    %1155 = vmatpush.msra.mxu0 0.0
    %1156 = vmatpush.msra.mxu0 0.0
    %1157 = vmatpush.msra.mxu0 0.0
    %1158 = vmatpush.msra.mxu0 0.0
    %1159 = vmatpush.msra.mxu0 0.0
    %1160 = vmatpush.msra.mxu0 0.0
    %1161 = vmatpush.msra.mxu0 0.0
    %1162 = vmatpush.msra.mxu0 0.0
    %1163 = vmatpush.msra.mxu0 0.0
    %1164 = vmatpush.msra.mxu0 0.0
    %1165 = vmatpush.msra.mxu0 0.0
    %1166 = vmatpush.msra.mxu0 0.0
    %1167 = vmatpush.msra.mxu0 0.0
    %1168 = vmatpush.msra.mxu0 0.0
    %1169 = vmatpush.msra.mxu0 0.0
    %1170 = vmatpush.msra.mxu0 %v177
    %1171 = vmatmul.f32.gmra.mxu0 %v1153
    %v1172 = vpop.f32.mrf.mxu0
    %v1173 = vadd.f32 0.0, %v1172
    %1174 = vdwg.mxu0
    %v1176 = vrot.slane %v1173, 4
    %v1178 = vadd.f32 %v63, %v1176
    %1179 = vmatpush.msra.mxu0 0.0
    %1180 = vmatpush.msra.mxu0 0.0
    %1181 = vmatpush.msra.mxu0 0.0
    %1182 = vmatpush.msra.mxu0 0.0
    %1183 = vmatpush.msra.mxu0 0.0
    %1184 = vmatpush.msra.mxu0 0.0
    %1185 = vmatpush.msra.mxu0 0.0
    %1186 = vmatpush.msra.mxu0 0.0
    %1187 = vmatpush.msra.mxu0 0.0
    %1188 = vmatpush.msra.mxu0 0.0
    %1189 = vmatpush.msra.mxu0 0.0
    %1190 = vmatpush.msra.mxu0 0.0
    %1191 = vmatpush.msra.mxu0 0.0
    %1192 = vmatpush.msra.mxu0 0.0
    %1193 = vmatpush.msra.mxu0 0.0
    %1194 = vmatpush.msra.mxu0 %v201
    %1195 = vmatmul.f32.gmra.mxu0 %v1153
    %v1196 = vpop.f32.mrf.mxu0
    %v1197 = vadd.f32 0.0, %v1196
    %1198 = vdwg.mxu0
    %v1200 = vrot.slane %v1197, 4
    %v1202 = vadd.f32 %v96, %v1200
    %1203 = vmatpush.msra.mxu0 0.0
    %1204 = vmatpush.msra.mxu0 0.0
    %1205 = vmatpush.msra.mxu0 0.0
    %1206 = vmatpush.msra.mxu0 0.0
    %1207 = vmatpush.msra.mxu0 0.0
    %1208 = vmatpush.msra.mxu0 0.0
    %1209 = vmatpush.msra.mxu0 0.0
    %1210 = vmatpush.msra.mxu0 0.0
    %1211 = vmatpush.msra.mxu0 0.0
    %1212 = vmatpush.msra.mxu0 0.0
    %1213 = vmatpush.msra.mxu0 0.0
    %1214 = vmatpush.msra.mxu0 0.0
    %1215 = vmatpush.msra.mxu0 0.0
    %1216 = vmatpush.msra.mxu0 0.0
    %1217 = vmatpush.msra.mxu0 0.0
    %1218 = vmatpush.msra.mxu0 %v225
    %1219 = vmatmul.f32.gmra.mxu0 %v1153
    %v1220 = vpop.f32.mrf.mxu0
    %v1221 = vadd.f32 0.0, %v1220
    %1222 = vdwg.mxu0
    %v1224 = vrot.slane %v1221, 4
    %v1226 = vadd.f32 %v129, %v1224
    %1227 = vmatpush.msra.mxu0 0.0
    %1228 = vmatpush.msra.mxu0 0.0
    %1229 = vmatpush.msra.mxu0 0.0
    %1230 = vmatpush.msra.mxu0 0.0
    %1231 = vmatpush.msra.mxu0 0.0
    %1232 = vmatpush.msra.mxu0 0.0
    %1233 = vmatpush.msra.mxu0 0.0
    %1234 = vmatpush.msra.mxu0 0.0
    %1235 = vmatpush.msra.mxu0 0.0
    %1236 = vmatpush.msra.mxu0 0.0
    %1237 = vmatpush.msra.mxu0 0.0
    %1238 = vmatpush.msra.mxu0 0.0
    %1239 = vmatpush.msra.mxu0 0.0
    %1240 = vmatpush.msra.mxu0 0.0
    %1241 = vmatpush.msra.mxu0 0.0
    %1242 = vmatpush.msra.mxu0 %v249
    %1243 = vmatmul.f32.gmra.mxu0 %v1153
    %v1244 = vpop.f32.mrf.mxu0
    %v1245 = vadd.f32 0.0, %v1244
    %1246 = vdwg.mxu0
    %v1248 = vrot.slane %v1245, 4
    %v1250 = vadd.f32 %v162, %v1248
    %v1251 = vxor.u32 %v1178, 2147483648
    %v1252 = vmul.f32 %v1251, 1.442695
    %v1253 = vpow.pop %v1252
    %v1254 = vadd.f32 %v1253, 1.0
    %v1255 = vrcp.pop %v1254
    %v1256 = vmul.f32 %v1254, %v1255
    %v1257 = vsub.f32 1.0, %v1256
    %v1258 = vmul.f32 %v1255, %v1257
    %v1259 = vadd.f32 %v1255, %v1258
    %vm1260 = vweird.f32 %v1254
    %vm1261 = vweird.f32 %v1255
    %vm1262 = vmor %vm1260, %vm1261
    %v1263 = vsel %vm1262, %v1255, %v1259
    %v1264 = vand.u32 2147483647, %v1254
    %vm1265 = vcmp.eq.f32.partialorder %v1264, 8.507059e+37
    %v1266 = vand.u32 %v1254, 2147483648
    %v1267 = vor.u32 1.1754944e-38, %v1266
    %v1268 = vsel %vm1265, %v1267, %v1263
    %v1269 = vmul.f32 1.0, %v1268
    %v1270 = vxor.u32 %v1202, 2147483648
    %v1271 = vmul.f32 %v1270, 1.442695
    %v1272 = vpow.pop %v1271
    %v1273 = vadd.f32 %v1272, 1.0
    %v1274 = vrcp.pop %v1273
    %v1275 = vmul.f32 %v1273, %v1274
    %v1276 = vsub.f32 1.0, %v1275
    %v1277 = vmul.f32 %v1274, %v1276
    %v1278 = vadd.f32 %v1274, %v1277
    %vm1279 = vweird.f32 %v1273
    %vm1280 = vweird.f32 %v1274
    %vm1281 = vmor %vm1279, %vm1280
    %v1282 = vsel %vm1281, %v1274, %v1278
    %v1283 = vand.u32 2147483647, %v1273
    %vm1284 = vcmp.eq.f32.partialorder %v1283, 8.507059e+37
    %v1285 = vand.u32 %v1273, 2147483648
    %v1286 = vor.u32 1.1754944e-38, %v1285
    %v1287 = vsel %vm1284, %v1286, %v1282
    %v1288 = vmul.f32 1.0, %v1287
    %v1289 = vtanh.pop %v1226
    %v1290 = vxor.u32 %v1250, 2147483648
    %v1291 = vmul.f32 %v1290, 1.442695
    %v1292 = vpow.pop %v1291
    %v1293 = vadd.f32 %v1292, 1.0
    %v1294 = vrcp.pop %v1293
    %v1295 = vmul.f32 %v1293, %v1294
    %v1296 = vsub.f32 1.0, %v1295
    %v1297 = vmul.f32 %v1294, %v1296
    %v1298 = vadd.f32 %v1294, %v1297
    %vm1299 = vweird.f32 %v1293
    %vm1300 = vweird.f32 %v1294
    %vm1301 = vmor %vm1299, %vm1300
    %v1302 = vsel %vm1301, %v1294, %v1298
    %v1303 = vand.u32 2147483647, %v1293
    %vm1304 = vcmp.eq.f32.partialorder %v1303, 8.507059e+37
    %v1305 = vand.u32 %v1293, 2147483648
    %v1306 = vor.u32 1.1754944e-38, %v1305
    %v1307 = vsel %vm1304, %v1306, %v1302
    %v1308 = vmul.f32 1.0, %v1307
    %v1310 = vrot.slane %v1148, 6
    %v1312 = vmul.f32 %v1288, %v1310
    %v1313 = vmul.f32 %v1269, %v1289
    %v1314 = vadd.f32 %v1312, %v1313
    %v1315 = vtanh.pop %v1314
    %v1316 = vmul.f32 %v1308, %v1315
    %v1318 = vrot.slane %v1316, 4
    %v1319 = vsel %vm171, %v1318, 0
    %1321 = vmatpush.msra.mxu0 0.0
    %1322 = vmatpush.msra.mxu0 0.0
    %1323 = vmatpush.msra.mxu0 0.0
    %1324 = vmatpush.msra.mxu0 0.0
    %1325 = vmatpush.msra.mxu0 0.0
    %1326 = vmatpush.msra.mxu0 0.0
    %1327 = vmatpush.msra.mxu0 0.0
    %1328 = vmatpush.msra.mxu0 0.0
    %1329 = vmatpush.msra.mxu0 0.0
    %1330 = vmatpush.msra.mxu0 0.0
    %1331 = vmatpush.msra.mxu0 0.0
    %1332 = vmatpush.msra.mxu0 0.0
    %1333 = vmatpush.msra.mxu0 0.0
    %1334 = vmatpush.msra.mxu0 0.0
    %1335 = vmatpush.msra.mxu0 0.0
    %1336 = vmatpush.msra.mxu0 %v177
    %1337 = vmatmul.f32.gmra.mxu0 %v1319
    %v1338 = vpop.f32.mrf.mxu0
    %v1339 = vadd.f32 0.0, %v1338
    %1340 = vdwg.mxu0
    %v1342 = vrot.slane %v1339, 2
    %v1344 = vadd.f32 %v63, %v1342
    %1345 = vmatpush.msra.mxu0 0.0
    %1346 = vmatpush.msra.mxu0 0.0
    %1347 = vmatpush.msra.mxu0 0.0
    %1348 = vmatpush.msra.mxu0 0.0
    %1349 = vmatpush.msra.mxu0 0.0
    %1350 = vmatpush.msra.mxu0 0.0
    %1351 = vmatpush.msra.mxu0 0.0
    %1352 = vmatpush.msra.mxu0 0.0
    %1353 = vmatpush.msra.mxu0 0.0
    %1354 = vmatpush.msra.mxu0 0.0
    %1355 = vmatpush.msra.mxu0 0.0
    %1356 = vmatpush.msra.mxu0 0.0
    %1357 = vmatpush.msra.mxu0 0.0
    %1358 = vmatpush.msra.mxu0 0.0
    %1359 = vmatpush.msra.mxu0 0.0
    %1360 = vmatpush.msra.mxu0 %v201
    %1361 = vmatmul.f32.gmra.mxu0 %v1319
    %v1362 = vpop.f32.mrf.mxu0
    %v1363 = vadd.f32 0.0, %v1362
    %1364 = vdwg.mxu0
    %v1366 = vrot.slane %v1363, 2
    %v1368 = vadd.f32 %v96, %v1366
    %1369 = vmatpush.msra.mxu0 0.0
    %1370 = vmatpush.msra.mxu0 0.0
    %1371 = vmatpush.msra.mxu0 0.0
    %1372 = vmatpush.msra.mxu0 0.0
    %1373 = vmatpush.msra.mxu0 0.0
    %1374 = vmatpush.msra.mxu0 0.0
    %1375 = vmatpush.msra.mxu0 0.0
    %1376 = vmatpush.msra.mxu0 0.0
    %1377 = vmatpush.msra.mxu0 0.0
    %1378 = vmatpush.msra.mxu0 0.0
    %1379 = vmatpush.msra.mxu0 0.0
    %1380 = vmatpush.msra.mxu0 0.0
    %1381 = vmatpush.msra.mxu0 0.0
    %1382 = vmatpush.msra.mxu0 0.0
    %1383 = vmatpush.msra.mxu0 0.0
    %1384 = vmatpush.msra.mxu0 %v225
    %1385 = vmatmul.f32.gmra.mxu0 %v1319
    %v1386 = vpop.f32.mrf.mxu0
    %v1387 = vadd.f32 0.0, %v1386
    %1388 = vdwg.mxu0
    %v1390 = vrot.slane %v1387, 2
    %v1392 = vadd.f32 %v129, %v1390
    %1393 = vmatpush.msra.mxu0 0.0
    %1394 = vmatpush.msra.mxu0 0.0
    %1395 = vmatpush.msra.mxu0 0.0
    %1396 = vmatpush.msra.mxu0 0.0
    %1397 = vmatpush.msra.mxu0 0.0
    %1398 = vmatpush.msra.mxu0 0.0
    %1399 = vmatpush.msra.mxu0 0.0
    %1400 = vmatpush.msra.mxu0 0.0
    %1401 = vmatpush.msra.mxu0 0.0
    %1402 = vmatpush.msra.mxu0 0.0
    %1403 = vmatpush.msra.mxu0 0.0
    %1404 = vmatpush.msra.mxu0 0.0
    %1405 = vmatpush.msra.mxu0 0.0
    %1406 = vmatpush.msra.mxu0 0.0
    %1407 = vmatpush.msra.mxu0 0.0
    %1408 = vmatpush.msra.mxu0 %v249
    %1409 = vmatmul.f32.gmra.mxu0 %v1319
    %v1410 = vpop.f32.mrf.mxu0
    %v1411 = vadd.f32 0.0, %v1410
    %1412 = vdwg.mxu0
    %v1414 = vrot.slane %v1411, 2
    %v1416 = vadd.f32 %v162, %v1414
    %v1417 = vxor.u32 %v1344, 2147483648
    %v1418 = vmul.f32 %v1417, 1.442695
    %v1419 = vpow.pop %v1418
    %v1420 = vadd.f32 %v1419, 1.0
    %v1421 = vrcp.pop %v1420
    %v1422 = vmul.f32 %v1420, %v1421
    %v1423 = vsub.f32 1.0, %v1422
    %v1424 = vmul.f32 %v1421, %v1423
    %v1425 = vadd.f32 %v1421, %v1424
    %vm1426 = vweird.f32 %v1420
    %vm1427 = vweird.f32 %v1421
    %vm1428 = vmor %vm1426, %vm1427
    %v1429 = vsel %vm1428, %v1421, %v1425
    %v1430 = vand.u32 2147483647, %v1420
    %vm1431 = vcmp.eq.f32.partialorder %v1430, 8.507059e+37
    %v1432 = vand.u32 %v1420, 2147483648
    %v1433 = vor.u32 1.1754944e-38, %v1432
    %v1434 = vsel %vm1431, %v1433, %v1429
    %v1435 = vmul.f32 1.0, %v1434
    %v1436 = vxor.u32 %v1368, 2147483648
    %v1437 = vmul.f32 %v1436, 1.442695
    %v1438 = vpow.pop %v1437
    %v1439 = vadd.f32 %v1438, 1.0
    %v1440 = vrcp.pop %v1439
    %v1441 = vmul.f32 %v1439, %v1440
    %v1442 = vsub.f32 1.0, %v1441
    %v1443 = vmul.f32 %v1440, %v1442
    %v1444 = vadd.f32 %v1440, %v1443
    %vm1445 = vweird.f32 %v1439
    %vm1446 = vweird.f32 %v1440
    %vm1447 = vmor %vm1445, %vm1446
    %v1448 = vsel %vm1447, %v1440, %v1444
    %v1449 = vand.u32 2147483647, %v1439
    %vm1450 = vcmp.eq.f32.partialorder %v1449, 8.507059e+37
    %v1451 = vand.u32 %v1439, 2147483648
    %v1452 = vor.u32 1.1754944e-38, %v1451
    %v1453 = vsel %vm1450, %v1452, %v1448
    %v1454 = vmul.f32 1.0, %v1453
    %v1455 = vtanh.pop %v1392
    %v1456 = vxor.u32 %v1416, 2147483648
    %v1457 = vmul.f32 %v1456, 1.442695
    %v1458 = vpow.pop %v1457
    %v1459 = vadd.f32 %v1458, 1.0
    %v1460 = vrcp.pop %v1459
    %v1461 = vmul.f32 %v1459, %v1460
    %v1462 = vsub.f32 1.0, %v1461
    %v1463 = vmul.f32 %v1460, %v1462
    %v1464 = vadd.f32 %v1460, %v1463
    %vm1465 = vweird.f32 %v1459
    %vm1466 = vweird.f32 %v1460
    %vm1467 = vmor %vm1465, %vm1466
    %v1468 = vsel %vm1467, %v1460, %v1464
    %v1469 = vand.u32 2147483647, %v1459
    %vm1470 = vcmp.eq.f32.partialorder %v1469, 8.507059e+37
    %v1471 = vand.u32 %v1459, 2147483648
    %v1472 = vor.u32 1.1754944e-38, %v1471
    %v1473 = vsel %vm1470, %v1472, %v1468
    %v1474 = vmul.f32 1.0, %v1473
    %v1476 = vrot.slane %v1314, 6
    %v1478 = vmul.f32 %v1454, %v1476
    %v1479 = vmul.f32 %v1435, %v1455
    %v1480 = vadd.f32 %v1478, %v1479
    %v1481 = vtanh.pop %v1480
    %v1482 = vmul.f32 %v1474, %v1481
    %v1483 = vld [vmem:[%s4] sm:$0x7f]
    %v1484 = vld [vmem:[%s5] sm:$0x1]
    %v1486 = vperm.slane %v1484, 0
    %v1489 = vrot.slane %v1482, 6
    %v1490 = vsel %vm171, %v1489, 0
    %v1493 = vsel %vm175, %v1483, 0
    %1495 = vmatpush.msra.mxu0 0.0
    %1496 = vmatpush.msra.mxu0 0.0
    %1497 = vmatpush.msra.mxu0 0.0
    %1498 = vmatpush.msra.mxu0 0.0
    %1499 = vmatpush.msra.mxu0 0.0
    %1500 = vmatpush.msra.mxu0 0.0
    %1501 = vmatpush.msra.mxu0 0.0
    %1502 = vmatpush.msra.mxu0 0.0
    %1503 = vmatpush.msra.mxu0 0.0
    %1504 = vmatpush.msra.mxu0 0.0
    %1505 = vmatpush.msra.mxu0 0.0
    %1506 = vmatpush.msra.mxu0 0.0
    %1507 = vmatpush.msra.mxu0 0.0
    %1508 = vmatpush.msra.mxu0 0.0
    %1509 = vmatpush.msra.mxu0 0.0
    %1510 = vmatpush.msra.mxu0 %v1493
    %1511 = vmatmul.f32.gmra.mxu0 %v1490
    %v1512 = vpop.f32.mrf.mxu0
    %v1513 = vadd.f32 %v1486, %v1512
    %1514 = vdwg.mxu0
    %vm1515 = vcmask 25600
    %1516 = vst.msk [vmem:[#allocation2] sm:$0x3] %vm1515, %v1513
    // Predicated region
    $region26: #{tpu_custom_call.1} parent=1 // pred_check
      _
    $region27: #{tpu_custom_call.1} parent=1 // pred_check_branch
      %1518 = sbr.rel (0) target = $region29
    $region28: #{tpu_custom_call.1} parent=1 // pred_region
      %1520 = vsyncadd [#allocation3], 0
      %s1522 = sshll.u32 [#allocation2], 4
      %s1523 = int_to_ptr.vmem [resolvable:$true] %s1522
      %s1524 = sshll.u32 %s6, 4
      %s1525 = int_to_ptr.hbm [resolvable:$true] %s1524
      %1527 = dma.vmem_to_hbm [thread:$0]  %s1523, 32, %s1525, [#allocation3]
    $region29: #{tpu_custom_call.1} parent=1 // pred_fallthru
      _
    // Predicated region
    $region30: #{tpu_custom_call.1} parent=1 // pred_check
      _
    $region31: #{tpu_custom_call.1} parent=1 // pred_check_branch
      %1529 = sbr.rel (0) target = $region33
    $region32: #{tpu_custom_call.1} parent=1 // pred_region
      %1531 = dma.done [#allocation3], 32
    $region33: #{tpu_custom_call.1} parent=1 // pred_fallthru
      _
    %1532 = vsyncpa [#allocation3], 1

</llo_original>
